<compile_context>
chip_gen: v6e
topology: v6e:2x2x1
jax: 0.10.0
libtpu: 0.0.40
codegen_flags: <defaults>
</compile_context>

<pallas_src>
import math
from functools import partial

import numpy as np
import jax
import jax.numpy as jnp
from jax.experimental import pallas as pl
from jax.experimental.pallas import tpu as pltpu

F32 = jnp.float32
BF16 = jnp.bfloat16


# ------------------------------- helpers ------------------------------------

def _token_tile(m, target=512):
    """Token-dim tile: full array if small, else a fixed 512-row tile (cdiv grid)."""
    return m if m <= target else target


def _bytes(*items):
    tot = 0
    for shape, dt in items:
        n = 1
        for d in shape:
            n *= int(d)
        tot += n * np.dtype(dt).itemsize
    return tot


def _cp(block_bytes, n_grid):
    # double-buffered blocks + slack; stay well under v7x's 64 MiB physical VMEM.
    est = 2 * block_bytes + (8 << 20)
    vmem = int(min(max(est, 24 << 20), 56 << 20))
    return pltpu.CompilerParams(
        dimension_semantics=("parallel",) * n_grid,
        vmem_limit_bytes=vmem)


# ----------------------------- Pallas kernels -------------------------------

def _linear_kernel(x_ref, w_ref, b_ref, o_ref):
    x = x_ref[...].astype(BF16)
    o_ref[...] = (jnp.dot(x, w_ref[...], preferred_element_type=F32)
                  + b_ref[...]).astype(o_ref.dtype)


def linear(x, w, b):
    """x: (M, K) f32, w: (K, N) bf16, b: (1, N) f32 -> (M, N) f32.
    M tiled over a parallel grid, weights stay resident."""
    M, K = x.shape
    N = w.shape[1]
    TM = _token_tile(M)
    cp = _cp(_bytes(((TM, K), F32), ((K, N), BF16), ((1, N), F32), ((TM, N), F32)), 1)
    return pl.pallas_call(
        _linear_kernel,
        out_shape=jax.ShapeDtypeStruct((M, N), F32),
        grid=(pl.cdiv(M, TM),),
        in_specs=[pl.BlockSpec((TM, K), lambda i: (i, 0)),
                  pl.BlockSpec((K, N), lambda i: (0, 0)),
                  pl.BlockSpec((1, N), lambda i: (0, 0))],
        out_specs=pl.BlockSpec((TM, N), lambda i: (i, 0)),
        compiler_params=cp,
    )(x, w, b)


def _self_attn_kernel(qin_ref, kin_ref, vin_ref, res_ref,
                      wq_ref, bq_ref, wk_ref, bk_ref, wv_ref, bv_ref,
                      wo_ref, bo_ref, g_ref, beta_ref, *rest,
                      nhead, scale, eps, has_mask):
    if has_mask:
        bias_ref, o_ref = rest
    else:
        bias_ref = None
        (o_ref,) = rest

    qin = qin_ref[0].astype(BF16)          # (TQ, D) queries (row tile)
    kin = kin_ref[0].astype(BF16)          # (Lq, D) key input (full)
    vin = vin_ref[0].astype(BF16)          # (Lq, D) value input (full)
    res = res_ref[0].astype(F32)           # (TQ, D) residual (row tile)
    D = res.shape[-1]
    hd = D // nhead

    # lane-dense full-width projections (MXU efficient, K=N=D), f32 accumulation
    q = jnp.dot(qin, wq_ref[...], preferred_element_type=F32) + bq_ref[...]
    k = jnp.dot(kin, wk_ref[...], preferred_element_type=F32) + bk_ref[...]
    v = jnp.dot(vin, wv_ref[...], preferred_element_type=F32) + bv_ref[...]
    q = q * scale
    wo = wo_ref[...]                       # (D, D) bf16, resident

    # per-head attention; out-projection folded per head into an f32 accumulator
    # (no lane concatenate, no separate (TQ, D) @ (D, D) output matmul)
    y = jnp.zeros(res.shape, F32)
    for h in range(nhead):                 # static unroll, H is small
        sl = slice(h * hd, (h + 1) * hd)
        qh = q[:, sl].astype(BF16)
        kh = k[:, sl].astype(BF16)
        vh = v[:, sl].astype(BF16)
        s = jax.lax.dot_general(qh, kh, (((1,), (1,)), ((), ())),
                                preferred_element_type=F32)            # (TQ, Lq)
        if has_mask:
            s = s + bias_ref[...]
        s = s - jnp.max(s, axis=-1, keepdims=True)
        p = jnp.exp(s)
        p = p / jnp.sum(p, axis=-1, keepdims=True)                     # exact normalization
        ctx = jnp.dot(p.astype(BF16), vh, preferred_element_type=F32)  # (TQ, hd)
        y = y + jnp.dot(ctx.astype(BF16), wo[sl, :],
                        preferred_element_type=F32)                    # (TQ, D)

    # out-proj bias + residual + LayerNorm (ln1), fused
    y = y + bo_ref[...] + res
    mean = jnp.mean(y, axis=-1, keepdims=True)
    c = y - mean
    var = jnp.mean(c * c, axis=-1, keepdims=True)
    o_ref[0] = (c * jax.lax.rsqrt(var + eps) * g_ref[...]
                + beta_ref[...]).astype(o_ref.dtype)


def self_attention_block(q_in, tgt, prm, *, nhead, eps=1e-5, bias=None):
    """Fused MHA self-attention + out-proj + residual + LayerNorm(ln1).
    q_in/tgt: (B, Lq, D) -> (B, Lq, D)."""
    B, Lq, D = q_in.shape
    has_mask = bias is not None
    scale = 1.0 / math.sqrt(D // nhead)
    TQ = Lq if Lq <= 128 else 128
    nq = pl.cdiv(Lq, TQ)

    in_specs = [
        pl.BlockSpec((1, TQ, D), lambda b, qi: (b, qi, 0)),   # query rows (tiled)
        pl.BlockSpec((1, Lq, D), lambda b, qi: (b, 0, 0)),    # key input  (full Lq)
        pl.BlockSpec((1, Lq, D), lambda b, qi: (b, 0, 0)),    # value input (full Lq)
        pl.BlockSpec((1, TQ, D), lambda b, qi: (b, qi, 0)),   # residual rows (tiled)
        pl.BlockSpec((D, D), lambda b, qi: (0, 0)),           # wq
        pl.BlockSpec((1, D), lambda b, qi: (0, 0)),           # bq
        pl.BlockSpec((D, D), lambda b, qi: (0, 0)),           # wk
        pl.BlockSpec((1, D), lambda b, qi: (0, 0)),           # bk
        pl.BlockSpec((D, D), lambda b, qi: (0, 0)),           # wv
        pl.BlockSpec((1, D), lambda b, qi: (0, 0)),           # bv
        pl.BlockSpec((D, D), lambda b, qi: (0, 0)),           # wo
        pl.BlockSpec((1, D), lambda b, qi: (0, 0)),           # bo
        pl.BlockSpec((1, D), lambda b, qi: (0, 0)),           # ln1 gamma
        pl.BlockSpec((1, D), lambda b, qi: (0, 0)),           # ln1 beta
    ]
    args = [q_in, q_in, tgt, tgt,
            prm["sa_wq"], prm["sa_bq"], prm["sa_wk"], prm["sa_bk"],
            prm["sa_wv"], prm["sa_bv"], prm["sa_wo"], prm["sa_bo"],
            prm["ln1_g"], prm["ln1_b"]]
    blocks = [((1, TQ, D), F32), ((1, Lq, D), F32), ((1, Lq, D), F32), ((1, TQ, D), F32),
              ((D, D), BF16), ((1, D), F32), ((D, D), BF16), ((1, D), F32),
              ((D, D), BF16), ((1, D), F32), ((D, D), BF16), ((1, D), F32),
              ((1, D), F32), ((1, D), F32), ((1, TQ, D), F32), ((3 * Lq, D), F32)]
    if has_mask:
        in_specs.append(pl.BlockSpec((TQ, Lq), lambda b, qi: (qi, 0)))
        args.append(bias)
        blocks.append(((TQ, Lq), F32))

    kernel = partial(_self_attn_kernel, nhead=nhead, scale=scale, eps=eps,
                     has_mask=has_mask)
    return pl.pallas_call(
        kernel,
        out_shape=jax.ShapeDtypeStruct((B, Lq, D), tgt.dtype),
        grid=(B, nq),
        in_specs=in_specs,
        out_specs=pl.BlockSpec((1, TQ, D), lambda b, qi: (b, qi, 0)),
        compiler_params=_cp(_bytes(*blocks), 2),
    )(*args)


def _ca_proj_kernel(x_ref, w_ref, b_ref, off_ref, wgt_ref, *, off_dim, nhead, lp):
    # one wide matmul for sampling offsets + attention logits; segmented softmax.
    x = x_ref[...].astype(BF16)
    y = jnp.dot(x, w_ref[...], preferred_element_type=F32) + b_ref[...]
    off_ref[...] = y[:, :off_dim].astype(off_ref.dtype)
    a = y[:, off_dim:]                                       # (TM, H*lp)
    m = a.shape[0]
    a = a.reshape(m, nhead, lp)                              # softmax over L*P per head
    a = a - jnp.max(a, axis=-1, keepdims=True)
    e = jnp.exp(a)
    e = e / jnp.sum(e, axis=-1, keepdims=True)
    wgt_ref[...] = e.reshape(m, nhead * lp).astype(wgt_ref.dtype)


def ca_proj_softmax(x, w, b, *, off_dim, nhead, lp):
    """x: (M, D) f32, w: (D, off_dim + H*lp) bf16.
    Returns (sampling offsets (M, off_dim), softmaxed attention weights (M, H*lp))."""
    M, K = x.shape
    N = w.shape[1]
    attn_dim = N - off_dim
    TM = _token_tile(M)
    cp = _cp(_bytes(((TM, K), F32), ((K, N), BF16), ((1, N), F32),
                    ((TM, off_dim), F32), ((TM, attn_dim), F32), ((TM, N), F32)), 1)
    return pl.pallas_call(
        partial(_ca_proj_kernel, off_dim=off_dim, nhead=nhead, lp=lp),
        out_shape=(jax.ShapeDtypeStruct((M, off_dim), F32),
                   jax.ShapeDtypeStruct((M, attn_dim), F32)),
        grid=(pl.cdiv(M, TM),),
        in_specs=[pl.BlockSpec((TM, K), lambda i: (i, 0)),
                  pl.BlockSpec((K, N), lambda i: (0, 0)),
                  pl.BlockSpec((1, N), lambda i: (0, 0))],
        out_specs=(pl.BlockSpec((TM, off_dim), lambda i: (i, 0)),
                   pl.BlockSpec((TM, attn_dim), lambda i: (i, 0))),
        compiler_params=cp,
    )(x, w, b)


def _ca_out_ffn_kernel(x_ref, wo_ref, bo_ref, res_ref, g2_ref, bt2_ref,
                       w1_ref, b1_ref, w2_ref, bb2_ref, g3_ref, bt3_ref,
                       o_ref, *, eps):
    # cross-attn output projection + residual + LayerNorm(ln2)
    x = x_ref[...].astype(BF16)
    y = (jnp.dot(x, wo_ref[...], preferred_element_type=F32)
         + bo_ref[...] + res_ref[...].astype(F32))
    mean = jnp.mean(y, axis=-1, keepdims=True)
    c = y - mean
    var = jnp.mean(c * c, axis=-1, keepdims=True)
    t = c * jax.lax.rsqrt(var + eps) * g2_ref[...] + bt2_ref[...]
    # FFN (linear1 -> relu -> linear2) + residual + LayerNorm(ln3)
    h = jnp.dot(t.astype(BF16), w1_ref[...], preferred_element_type=F32) + b1_ref[...]
    h = jnp.maximum(h, 0.0)
    y2 = (jnp.dot(h.astype(BF16), w2_ref[...], preferred_element_type=F32)
          + bb2_ref[...] + t)
    mean2 = jnp.mean(y2, axis=-1, keepdims=True)
    c2 = y2 - mean2
    var2 = jnp.mean(c2 * c2, axis=-1, keepdims=True)
    o_ref[...] = (c2 * jax.lax.rsqrt(var2 + eps) * g3_ref[...]
                  + bt3_ref[...]).astype(o_ref.dtype)


def ca_out_ffn_block(x, residual, prm, *, eps=1e-5):
    """One fused kernel: LN3(t + FFN(t)) where t = LN2(residual + x @ W_out + b)."""
    M, D = x.shape
    Dff = prm["ff_w1"].shape[1]
    TM = _token_tile(M)
    cp = _cp(_bytes(((TM, D), F32), ((D, D), BF16), ((1, D), F32), ((TM, D), F32),
                    ((1, D), F32), ((1, D), F32),
                    ((D, Dff), BF16), ((1, Dff), F32),
                    ((Dff, D), BF16), ((1, D), F32),
                    ((1, D), F32), ((1, D), F32),
                    ((TM, Dff), F32), ((TM, D), F32), ((TM, D), F32)), 1)
    return pl.pallas_call(
        partial(_ca_out_ffn_kernel, eps=eps),
        out_shape=jax.ShapeDtypeStruct((M, D), F32),
        grid=(pl.cdiv(M, TM),),
        in_specs=[pl.BlockSpec((TM, D), lambda i: (i, 0)),
                  pl.BlockSpec((D, D), lambda i: (0, 0)),
                  pl.BlockSpec((1, D), lambda i: (0, 0)),
                  pl.BlockSpec((TM, D), lambda i: (i, 0)),
                  pl.BlockSpec((1, D), lambda i: (0, 0)),
                  pl.BlockSpec((1, D), lambda i: (0, 0)),
                  pl.BlockSpec((D, Dff), lambda i: (0, 0)),
                  pl.BlockSpec((1, Dff), lambda i: (0, 0)),
                  pl.BlockSpec((Dff, D), lambda i: (0, 0)),
                  pl.BlockSpec((1, D), lambda i: (0, 0)),
                  pl.BlockSpec((1, D), lambda i: (0, 0)),
                  pl.BlockSpec((1, D), lambda i: (0, 0))],
        out_specs=pl.BlockSpec((TM, D), lambda i: (i, 0)),
        compiler_params=cp,
    )(x, prm["ca_w_out"], prm["ca_b_out"], residual,
      prm["ln2_g"], prm["ln2_b"],
      prm["ff_w1"], prm["ff_b1"], prm["ff_w2"], prm["ff_b2"],
      prm["ln3_g"], prm["ln3_b"])


# -------------------------- plain-JAX glue pieces ----------------------------

def ms_deform_attn_core(value, spatial_shapes, level_start_index,
                        sampling_locations, attn_weights):
    """Bilinear sampling + softmax-weighted aggregation, folded per level.

    value stays token-major (B, Lv, H, hd): the gather pairs a head index with each
    sampling location, so no per-level (or any) value transposes are needed.

    value:               (B, Lv, H, hd)
    sampling_locations:  (B, Lq, H, L, P, 2) normalized (x, y)
    attn_weights:        (B, Lq, H, L, P)   already softmaxed over L*P
    returns:             (B, Lq, H*hd)
    """
    # TODO(synk): the data-dependent bilinear gather stays in plain JAX (no clean Pallas gather on TPU).
    B, Lv, H, hd = value.shape
    _, Lq, _, L, P, _ = sampling_locations.shape
    acc = jnp.zeros((B, Lq, H, hd), F32)

    for lvl, (h_l, w_l) in enumerate(spatial_shapes):
        start = level_start_index[lvl]
        value_l = value[:, start:start + h_l * w_l]                 # (B, HW, H, hd)
        loc = jnp.swapaxes(sampling_locations[:, :, :, lvl], 2, 3)  # (B, Lq, P, H, 2)
        w_lvl = jnp.swapaxes(attn_weights[:, :, :, lvl], 2, 3)      # (B, Lq, P, H)

        x = loc[..., 0] * w_l - 0.5
        y = loc[..., 1] * h_l - 0.5
        x0 = jnp.floor(x)
        y0 = jnp.floor(y)
        wx1 = x - x0
        wx0 = 1.0 - wx1
        wy1 = y - y0
        wy0 = 1.0 - wy1

        def corner(xi, yi):
            valid = (xi >= 0) & (xi <= w_l - 1) & (yi >= 0) & (yi <= h_l - 1)
            xc = jnp.clip(xi, 0, w_l - 1).astype(jnp.int32)
            yc = jnp.clip(yi, 0, h_l - 1).astype(jnp.int32)
            idx = (yc * w_l + xc).reshape(B, Lq * P, H, 1)
            g = jnp.take_along_axis(value_l, idx, axis=1)           # (B, Lq*P, H, hd)
            g = g.reshape(B, Lq, P, H, hd)
            return g * valid[..., None].astype(g.dtype)

        samp = (corner(x0, y0) * (wx0 * wy0)[..., None]
                + corner(x0 + 1.0, y0) * (wx1 * wy0)[..., None]
                + corner(x0, y0 + 1.0) * (wx0 * wy1)[..., None]
                + corner(x0 + 1.0, y0 + 1.0) * (wx1 * wy1)[..., None])  # (B,Lq,P,H,hd)

        acc = acc + jnp.sum(samp * w_lvl[..., None], axis=2)        # (B, Lq, H, hd)

    return acc.reshape(B, Lq, H * hd)


# ------------------------------- parameters ----------------------------------

def _xavier(key, fan_in, fan_out):
    lim = math.sqrt(6.0 / (fan_in + fan_out))
    return jax.random.uniform(key, (fan_in, fan_out), F32, -lim, lim)


def init_params(key, d_model, nhead, dim_feedforward, n_levels, n_points):
    ks = jax.random.split(key, 10)
    D = d_model
    off_dim = nhead * n_levels * n_points * 2
    attn_dim = nhead * n_levels * n_points
    return {
        # self-attention
        "sa_wq": _xavier(ks[0], D, D), "sa_bq": jnp.zeros((D,), F32),
        "sa_wk": _xavier(ks[1], D, D), "sa_bk": jnp.zeros((D,), F32),
        "sa_wv": _xavier(ks[2], D, D), "sa_bv": jnp.zeros((D,), F32),
        "sa_wo": _xavier(ks[3], D, D), "sa_bo": jnp.zeros((D,), F32),
        "ln1_g": jnp.ones((D,), F32), "ln1_b": jnp.zeros((D,), F32),
        # MS deformable cross-attention
        "ca_w_off": _xavier(ks[4], D, off_dim), "ca_b_off": jnp.zeros((off_dim,), F32),
        "ca_w_attn": _xavier(ks[5], D, attn_dim), "ca_b_attn": jnp.zeros((attn_dim,), F32),
        "ca_w_val": _xavier(ks[6], D, D), "ca_b_val": jnp.zeros((D,), F32),
        "ca_w_out": _xavier(ks[7], D, D), "ca_b_out": jnp.zeros((D,), F32),
        "ln2_g": jnp.ones((D,), F32), "ln2_b": jnp.zeros((D,), F32),
        # FFN
        "ff_w1": _xavier(ks[8], D, dim_feedforward), "ff_b1": jnp.zeros((dim_feedforward,), F32),
        "ff_w2": _xavier(ks[9], dim_feedforward, D), "ff_b2": jnp.zeros((D,), F32),
        "ln3_g": jnp.ones((D,), F32), "ln3_b": jnp.zeros((D,), F32),
    }


def prepare_params(p):
    """Kernel-ready params (done ONCE): weights bf16 (halves weight DMA, feeds the MXU),
    biases / LN params as (1, N) f32 rows, CA offset/attn weights pre-concatenated."""
    bf = lambda w: w.astype(BF16)
    row = lambda v: v.reshape(1, -1).astype(F32)
    return {
        "sa_wq": bf(p["sa_wq"]), "sa_bq": row(p["sa_bq"]),
        "sa_wk": bf(p["sa_wk"]), "sa_bk": row(p["sa_bk"]),
        "sa_wv": bf(p["sa_wv"]), "sa_bv": row(p["sa_bv"]),
        "sa_wo": bf(p["sa_wo"]), "sa_bo": row(p["sa_bo"]),
        "ln1_g": row(p["ln1_g"]), "ln1_b": row(p["ln1_b"]),
        "ca_w_oa": bf(jnp.concatenate([p["ca_w_off"], p["ca_w_attn"]], axis=1)),
        "ca_b_oa": row(jnp.concatenate([p["ca_b_off"], p["ca_b_attn"]], axis=0)),
        "ca_w_val": bf(p["ca_w_val"]), "ca_b_val": row(p["ca_b_val"]),
        "ca_w_out": bf(p["ca_w_out"]), "ca_b_out": row(p["ca_b_out"]),
        "ln2_g": row(p["ln2_g"]), "ln2_b": row(p["ln2_b"]),
        "ff_w1": bf(p["ff_w1"]), "ff_b1": row(p["ff_b1"]),
        "ff_w2": bf(p["ff_w2"]), "ff_b2": row(p["ff_b2"]),
        "ln3_g": row(p["ln3_g"]), "ln3_b": row(p["ln3_b"]),
    }


# ------------------------------ decoder layer ---------------------------------

def decoder_layer_forward(prm, tgt, reference_points, memory,
                          memory_spatial_shapes, memory_level_start_index,
                          attn_mask=None, memory_mask=None, query_pos_embed=None,
                          nhead=8, n_levels=4, n_points=4, eps=1e-5):
    B, Lq, D = tgt.shape
    H = nhead
    hd = D // H
    Lv = memory.shape[1]

    def with_pos(x, pos):
        return x if pos is None else x + pos

    # ---------------- fused self attention block (attn + out proj + LN1) ------------
    q_in = with_pos(tgt, query_pos_embed)

    bias = None
    if attn_mask is not None:
        # reference semantics: True -> attend (0), False -> blocked.
        # Large finite negative (not -inf) so fully-masked rows cannot produce NaNs.
        bias = jnp.where(attn_mask.astype(bool), 0.0, -1e9).astype(F32)

    tgt1 = self_attention_block(q_in, tgt, prm, nhead=H, eps=eps, bias=bias)   # (B, Lq, D)

    # ---------------- MS deformable cross attention ----------------
    q2 = with_pos(tgt1, query_pos_embed).reshape(B * Lq, D)

    off_dim = H * n_levels * n_points * 2
    lp = n_levels * n_points
    offsets, attn_w = ca_proj_softmax(q2, prm["ca_w_oa"], prm["ca_b_oa"],
                                      off_dim=off_dim, nhead=H, lp=lp)
    offsets = offsets.reshape(B, Lq, H, n_levels, n_points, 2)
    attn_w = attn_w.reshape(B, Lq, H, n_levels, n_points)

    # value projection; keep token-major (B, Lv, H, hd) -> no HBM transposes downstream
    value = linear(memory.reshape(B * Lv, D), prm["ca_w_val"], prm["ca_b_val"])
    value = value.reshape(B, Lv, H, hd)
    if memory_mask is not None:
        value = value * memory_mask.astype(value.dtype).reshape(B, Lv, 1, 1)

    # reference_points: (B, Lq, L, 2) normalized; offsets normalized by (W, H) per level
    normalizer = jnp.array([[w_l, h_l] for (h_l, w_l) in memory_spatial_shapes], dtype=F32)
    loc = (reference_points[:, :, None, :, None, :]
           + offsets / normalizer[None, None, None, :, None, :])               # (B,Lq,H,L,P,2)

    agg = ms_deform_attn_core(value, memory_spatial_shapes,
                              memory_level_start_index, loc, attn_w)           # (B, Lq, D)

    # fused: ca out proj + residual + LN2 + FFN + residual + LN3 (one kernel)
    out = ca_out_ffn_block(agg.reshape(B * Lq, D), tgt1.reshape(B * Lq, D), prm, eps=eps)
    return out.reshape(B, Lq, D)


# ---------------------------------- main --------------------------------------

if __name__ == "__main__":
    # small shapes consistent with the module defaults (scaled down)
    B, Lq, D, H = 2, 8, 64, 4
    Dff = 128
    n_levels, n_points = 2, 4
    spatial_shapes = [(8, 8), (4, 4)]            # (H_l, W_l) per level
    level_start_index = [0, 64]
    Lv = sum(h * w for h, w in spatial_shapes)   # 80

    key = jax.random.PRNGKey(0)
    kp, k1, k2, k3, k4 = jax.random.split(key, 5)

    params = init_params(kp, D, H, Dff, n_levels, n_points)
    prep = prepare_params(params)                # bf16 weights, pre-concat CA weights

    tgt = jax.random.normal(k1, (B, Lq, D), F32)
    memory = jax.random.normal(k2, (B, Lv, D), F32)
    reference_points = jax.random.uniform(k3, (B, Lq, n_levels, 2), F32)
    query_pos_embed = 0.1 * jax.random.normal(k4, (B, Lq, D), F32)

    # run 1: no attention mask (fast path, no bias tensor)
    out = decoder_layer_forward(
        prep, tgt, reference_points, memory,
        spatial_shapes, level_start_index,
        attn_mask=None, memory_mask=None, query_pos_embed=query_pos_embed,
        nhead=H, n_levels=n_levels, n_points=n_points)
    out = jax.block_until_ready(out)
    ok1 = out.shape == (B, Lq, D) and bool(jnp.all(jnp.isfinite(out)))

    # run 2: with a boolean mask (True = attend) to exercise the masked variant
    attn_mask = jnp.tril(jnp.ones((Lq, Lq), jnp.bool_))
    out_m = decoder_layer_forward(
        prep, tgt, reference_points, memory,
        spatial_shapes, level_start_index,
        attn_mask=attn_mask, memory_mask=None, query_pos_embed=query_pos_embed,
        nhead=H, n_levels=n_levels, n_points=n_points)
    out_m = jax.block_until_ready(out_m)
    ok2 = out_m.shape == (B, Lq, D) and bool(jnp.all(jnp.isfinite(out_m)))

    assert ok1 and ok2
    print("KERNEL_OK")
</pallas_src>

<mosaic_0001>
module attributes {stable_mosaic.version = 11 : i64} {
  func.func @_self_attn_kernel(%arg0: i32, %arg1: i32, %arg2: memref<1x8x64xf32, #tpu.memory_space<vmem>>, %arg3: memref<1x8x64xf32, #tpu.memory_space<vmem>>, %arg4: memref<1x8x64xf32, #tpu.memory_space<vmem>>, %arg5: memref<1x8x64xf32, #tpu.memory_space<vmem>>, %arg6: memref<64x64xbf16, #tpu.memory_space<vmem>>, %arg7: memref<1x64xf32, #tpu.memory_space<vmem>>, %arg8: memref<64x64xbf16, #tpu.memory_space<vmem>>, %arg9: memref<1x64xf32, #tpu.memory_space<vmem>>, %arg10: memref<64x64xbf16, #tpu.memory_space<vmem>>, %arg11: memref<1x64xf32, #tpu.memory_space<vmem>>, %arg12: memref<64x64xbf16, #tpu.memory_space<vmem>>, %arg13: memref<1x64xf32, #tpu.memory_space<vmem>>, %arg14: memref<1x64xf32, #tpu.memory_space<vmem>>, %arg15: memref<1x64xf32, #tpu.memory_space<vmem>>, %arg16: memref<1x8x64xf32, #tpu.memory_space<vmem>>) attributes {dimension_semantics = [#tpu.dimension_semantics<parallel>, #tpu.dimension_semantics<parallel>], iteration_bounds = array<i64: 2, 1>, scalar_prefetch = 0 : i64, scratch_operands = 0 : i64, tpu.core_type = #tpu.core_type<tc>, window_params = [{transform_indices = @transform_0, window_bounds = array<i64: 1, 8, 64>}, {transform_indices = @transform_1, window_bounds = array<i64: 1, 8, 64>}, {transform_indices = @transform_2, window_bounds = array<i64: 1, 8, 64>}, {transform_indices = @transform_3, window_bounds = array<i64: 1, 8, 64>}, {pipeline_mode = #tpu.pipeline_mode<synchronous>, transform_indices = @transform_4, window_bounds = array<i64: 64, 64>}, {pipeline_mode = #tpu.pipeline_mode<synchronous>, transform_indices = @transform_5, window_bounds = array<i64: 1, 64>}, {pipeline_mode = #tpu.pipeline_mode<synchronous>, transform_indices = @transform_6, window_bounds = array<i64: 64, 64>}, {pipeline_mode = #tpu.pipeline_mode<synchronous>, transform_indices = @transform_7, window_bounds = array<i64: 1, 64>}, {pipeline_mode = #tpu.pipeline_mode<synchronous>, transform_indices = @transform_8, window_bounds = array<i64: 64, 64>}, {pipeline_mode = #tpu.pipeline_mode<synchronous>, transform_indices = @transform_9, window_bounds = array<i64: 1, 64>}, {pipeline_mode = #tpu.pipeline_mode<synchronous>, transform_indices = @transform_10, window_bounds = array<i64: 64, 64>}, {pipeline_mode = #tpu.pipeline_mode<synchronous>, transform_indices = @transform_11, window_bounds = array<i64: 1, 64>}, {pipeline_mode = #tpu.pipeline_mode<synchronous>, transform_indices = @transform_12, window_bounds = array<i64: 1, 64>}, {pipeline_mode = #tpu.pipeline_mode<synchronous>, transform_indices = @transform_13, window_bounds = array<i64: 1, 64>}, {transform_indices = @transform_14, window_bounds = array<i64: 1, 8, 64>}]} {
    %c0 = arith.constant 0 : index
    %c0_0 = arith.constant 0 : index
    %c0_1 = arith.constant 0 : index
    %0 = vector.load %arg2[%c0, %c0_0, %c0_1] : memref<1x8x64xf32, #tpu.memory_space<vmem>>, vector<1x8x64xf32>
    %1 = vector.shape_cast %0 : vector<1x8x64xf32> to vector<8x64xf32>
    %2 = arith.truncf %1 : vector<8x64xf32> to vector<8x64xbf16>
    %c0_2 = arith.constant 0 : index
    %c0_3 = arith.constant 0 : index
    %c0_4 = arith.constant 0 : index
    %3 = vector.load %arg3[%c0_2, %c0_3, %c0_4] : memref<1x8x64xf32, #tpu.memory_space<vmem>>, vector<1x8x64xf32>
    %4 = vector.shape_cast %3 : vector<1x8x64xf32> to vector<8x64xf32>
    %5 = arith.truncf %4 : vector<8x64xf32> to vector<8x64xbf16>
    %c0_5 = arith.constant 0 : index
    %c0_6 = arith.constant 0 : index
    %c0_7 = arith.constant 0 : index
    %6 = vector.load %arg4[%c0_5, %c0_6, %c0_7] : memref<1x8x64xf32, #tpu.memory_space<vmem>>, vector<1x8x64xf32>
    %7 = vector.shape_cast %6 : vector<1x8x64xf32> to vector<8x64xf32>
    %8 = arith.truncf %7 : vector<8x64xf32> to vector<8x64xbf16>
    %c0_8 = arith.constant 0 : index
    %c0_9 = arith.constant 0 : index
    %c0_10 = arith.constant 0 : index
    %9 = vector.load %arg5[%c0_8, %c0_9, %c0_10] : memref<1x8x64xf32, #tpu.memory_space<vmem>>, vector<1x8x64xf32>
    %10 = vector.shape_cast %9 : vector<1x8x64xf32> to vector<8x64xf32>
    %c0_11 = arith.constant 0 : index
    %c0_12 = arith.constant 0 : index
    %11 = vector.load %arg6[%c0_11, %c0_12] : memref<64x64xbf16, #tpu.memory_space<vmem>>, vector<64x64xbf16>
    %cst = arith.constant dense<0.000000e+00> : vector<8x64xf32>
    %12 = tpu.matmul %2, %11, %cst {dimension_numbers = #tpu.dot_dimension_numbers<[1], [0], [0], [1], [0, 0, 1, 1], [], []>} : vector<8x64xbf16>, vector<64x64xbf16>, vector<8x64xf32> -> vector<8x64xf32>
    %c0_13 = arith.constant 0 : index
    %c0_14 = arith.constant 0 : index
    %13 = vector.load %arg7[%c0_13, %c0_14] : memref<1x64xf32, #tpu.memory_space<vmem>>, vector<1x64xf32>
    %14 = vector.broadcast %13 : vector<1x64xf32> to vector<8x64xf32>
    %15 = arith.addf %12, %14 : vector<8x64xf32>
    %c0_15 = arith.constant 0 : index
    %c0_16 = arith.constant 0 : index
    %16 = vector.load %arg8[%c0_15, %c0_16] : memref<64x64xbf16, #tpu.memory_space<vmem>>, vector<64x64xbf16>
    %cst_17 = arith.constant dense<0.000000e+00> : vector<8x64xf32>
    %17 = tpu.matmul %5, %16, %cst_17 {dimension_numbers = #tpu.dot_dimension_numbers<[1], [0], [0], [1], [0, 0, 1, 1], [], []>} : vector<8x64xbf16>, vector<64x64xbf16>, vector<8x64xf32> -> vector<8x64xf32>
    %c0_18 = arith.constant 0 : index
    %c0_19 = arith.constant 0 : index
    %18 = vector.load %arg9[%c0_18, %c0_19] : memref<1x64xf32, #tpu.memory_space<vmem>>, vector<1x64xf32>
    %19 = vector.broadcast %18 : vector<1x64xf32> to vector<8x64xf32>
    %20 = arith.addf %17, %19 : vector<8x64xf32>
    %c0_20 = arith.constant 0 : index
    %c0_21 = arith.constant 0 : index
    %21 = vector.load %arg10[%c0_20, %c0_21] : memref<64x64xbf16, #tpu.memory_space<vmem>>, vector<64x64xbf16>
    %cst_22 = arith.constant dense<0.000000e+00> : vector<8x64xf32>
    %22 = tpu.matmul %8, %21, %cst_22 {dimension_numbers = #tpu.dot_dimension_numbers<[1], [0], [0], [1], [0, 0, 1, 1], [], []>} : vector<8x64xbf16>, vector<64x64xbf16>, vector<8x64xf32> -> vector<8x64xf32>
    %c0_23 = arith.constant 0 : index
    %c0_24 = arith.constant 0 : index
    %23 = vector.load %arg11[%c0_23, %c0_24] : memref<1x64xf32, #tpu.memory_space<vmem>>, vector<1x64xf32>
    %24 = vector.broadcast %23 : vector<1x64xf32> to vector<8x64xf32>
    %25 = arith.addf %22, %24 : vector<8x64xf32>
    %cst_25 = arith.constant 2.500000e-01 : f32
    %26 = vector.broadcast %cst_25 : f32 to vector<8x64xf32>
    %27 = arith.mulf %15, %26 : vector<8x64xf32>
    %c0_26 = arith.constant 0 : index
    %c0_27 = arith.constant 0 : index
    %28 = vector.load %arg12[%c0_26, %c0_27] : memref<64x64xbf16, #tpu.memory_space<vmem>>, vector<64x64xbf16>
    %cst_28 = arith.constant 0.000000e+00 : f32
    %29 = vector.broadcast %cst_28 : f32 to vector<8x64xf32>
    %30 = vector.extract_strided_slice %27 {offsets = [0, 0], sizes = [8, 16], strides = [1, 1]} : vector<8x64xf32> to vector<8x16xf32>
    %31 = arith.truncf %30 : vector<8x16xf32> to vector<8x16xbf16>
    %32 = vector.extract_strided_slice %20 {offsets = [0, 0], sizes = [8, 16], strides = [1, 1]} : vector<8x64xf32> to vector<8x16xf32>
    %33 = arith.truncf %32 : vector<8x16xf32> to vector<8x16xbf16>
    %34 = vector.extract_strided_slice %25 {offsets = [0, 0], sizes = [8, 16], strides = [1, 1]} : vector<8x64xf32> to vector<8x16xf32>
    %35 = arith.truncf %34 : vector<8x16xf32> to vector<8x16xbf16>
    %cst_29 = arith.constant dense<0.000000e+00> : vector<8x8xf32>
    %36 = tpu.matmul %31, %33, %cst_29 {dimension_numbers = #tpu.dot_dimension_numbers<[1], [1], [0], [0], [0, 0, 1, 0], [], []>} : vector<8x16xbf16>, vector<8x16xbf16>, vector<8x8xf32> -> vector<8x8xf32>
    %cst_30 = arith.constant dense<0xFF800000> : vector<8xf32>
    %37 = vector.multi_reduction <maximumf>, %36, %cst_30 [1] : vector<8x8xf32> to vector<8xf32>
    %38 = vector.shape_cast %37 : vector<8xf32> to vector<8x1xf32>
    %39 = vector.broadcast %38 : vector<8x1xf32> to vector<8x8xf32>
    %40 = arith.subf %36, %39 : vector<8x8xf32>
    %41 = math.exp %40 : vector<8x8xf32>
    %cst_31 = arith.constant dense<0.000000e+00> : vector<8xf32>
    %42 = vector.multi_reduction <add>, %41, %cst_31 [1] : vector<8x8xf32> to vector<8xf32>
    %43 = vector.shape_cast %42 : vector<8xf32> to vector<8x1xf32>
    %44 = vector.broadcast %43 : vector<8x1xf32> to vector<8x8xf32>
    %45 = arith.divf %41, %44 : vector<8x8xf32>
    %46 = arith.truncf %45 : vector<8x8xf32> to vector<8x8xbf16>
    %cst_32 = arith.constant dense<0.000000e+00> : vector<8x16xf32>
    %47 = tpu.matmul %46, %35, %cst_32 {dimension_numbers = #tpu.dot_dimension_numbers<[1], [0], [0], [1], [0, 0, 1, 1], [], []>} : vector<8x8xbf16>, vector<8x16xbf16>, vector<8x16xf32> -> vector<8x16xf32>
    %48 = arith.truncf %47 : vector<8x16xf32> to vector<8x16xbf16>
    %49 = vector.extract_strided_slice %28 {offsets = [0, 0], sizes = [16, 64], strides = [1, 1]} : vector<64x64xbf16> to vector<16x64xbf16>
    %cst_33 = arith.constant dense<0.000000e+00> : vector<8x64xf32>
    %50 = tpu.matmul %48, %49, %cst_33 {dimension_numbers = #tpu.dot_dimension_numbers<[1], [0], [0], [1], [0, 0, 1, 1], [], []>} : vector<8x16xbf16>, vector<16x64xbf16>, vector<8x64xf32> -> vector<8x64xf32>
    %51 = arith.addf %29, %50 : vector<8x64xf32>
    %52 = vector.extract_strided_slice %27 {offsets = [0, 16], sizes = [8, 16], strides = [1, 1]} : vector<8x64xf32> to vector<8x16xf32>
    %53 = arith.truncf %52 : vector<8x16xf32> to vector<8x16xbf16>
    %54 = vector.extract_strided_slice %20 {offsets = [0, 16], sizes = [8, 16], strides = [1, 1]} : vector<8x64xf32> to vector<8x16xf32>
    %55 = arith.truncf %54 : vector<8x16xf32> to vector<8x16xbf16>
    %56 = vector.extract_strided_slice %25 {offsets = [0, 16], sizes = [8, 16], strides = [1, 1]} : vector<8x64xf32> to vector<8x16xf32>
    %57 = arith.truncf %56 : vector<8x16xf32> to vector<8x16xbf16>
    %cst_34 = arith.constant dense<0.000000e+00> : vector<8x8xf32>
    %58 = tpu.matmul %53, %55, %cst_34 {dimension_numbers = #tpu.dot_dimension_numbers<[1], [1], [0], [0], [0, 0, 1, 0], [], []>} : vector<8x16xbf16>, vector<8x16xbf16>, vector<8x8xf32> -> vector<8x8xf32>
    %cst_35 = arith.constant dense<0xFF800000> : vector<8xf32>
    %59 = vector.multi_reduction <maximumf>, %58, %cst_35 [1] : vector<8x8xf32> to vector<8xf32>
    %60 = vector.shape_cast %59 : vector<8xf32> to vector<8x1xf32>
    %61 = vector.broadcast %60 : vector<8x1xf32> to vector<8x8xf32>
    %62 = arith.subf %58, %61 : vector<8x8xf32>
    %63 = math.exp %62 : vector<8x8xf32>
    %cst_36 = arith.constant dense<0.000000e+00> : vector<8xf32>
    %64 = vector.multi_reduction <add>, %63, %cst_36 [1] : vector<8x8xf32> to vector<8xf32>
    %65 = vector.shape_cast %64 : vector<8xf32> to vector<8x1xf32>
    %66 = vector.broadcast %65 : vector<8x1xf32> to vector<8x8xf32>
    %67 = arith.divf %63, %66 : vector<8x8xf32>
    %68 = arith.truncf %67 : vector<8x8xf32> to vector<8x8xbf16>
    %cst_37 = arith.constant dense<0.000000e+00> : vector<8x16xf32>
    %69 = tpu.matmul %68, %57, %cst_37 {dimension_numbers = #tpu.dot_dimension_numbers<[1], [0], [0], [1], [0, 0, 1, 1], [], []>} : vector<8x8xbf16>, vector<8x16xbf16>, vector<8x16xf32> -> vector<8x16xf32>
    %70 = arith.truncf %69 : vector<8x16xf32> to vector<8x16xbf16>
    %71 = vector.extract_strided_slice %28 {offsets = [16, 0], sizes = [16, 64], strides = [1, 1]} : vector<64x64xbf16> to vector<16x64xbf16>
    %cst_38 = arith.constant dense<0.000000e+00> : vector<8x64xf32>
    %72 = tpu.matmul %70, %71, %cst_38 {dimension_numbers = #tpu.dot_dimension_numbers<[1], [0], [0], [1], [0, 0, 1, 1], [], []>} : vector<8x16xbf16>, vector<16x64xbf16>, vector<8x64xf32> -> vector<8x64xf32>
    %73 = arith.addf %51, %72 : vector<8x64xf32>
    %74 = vector.extract_strided_slice %27 {offsets = [0, 32], sizes = [8, 16], strides = [1, 1]} : vector<8x64xf32> to vector<8x16xf32>
    %75 = arith.truncf %74 : vector<8x16xf32> to vector<8x16xbf16>
    %76 = vector.extract_strided_slice %20 {offsets = [0, 32], sizes = [8, 16], strides = [1, 1]} : vector<8x64xf32> to vector<8x16xf32>
    %77 = arith.truncf %76 : vector<8x16xf32> to vector<8x16xbf16>
    %78 = vector.extract_strided_slice %25 {offsets = [0, 32], sizes = [8, 16], strides = [1, 1]} : vector<8x64xf32> to vector<8x16xf32>
    %79 = arith.truncf %78 : vector<8x16xf32> to vector<8x16xbf16>
    %cst_39 = arith.constant dense<0.000000e+00> : vector<8x8xf32>
    %80 = tpu.matmul %75, %77, %cst_39 {dimension_numbers = #tpu.dot_dimension_numbers<[1], [1], [0], [0], [0, 0, 1, 0], [], []>} : vector<8x16xbf16>, vector<8x16xbf16>, vector<8x8xf32> -> vector<8x8xf32>
    %cst_40 = arith.constant dense<0xFF800000> : vector<8xf32>
    %81 = vector.multi_reduction <maximumf>, %80, %cst_40 [1] : vector<8x8xf32> to vector<8xf32>
    %82 = vector.shape_cast %81 : vector<8xf32> to vector<8x1xf32>
    %83 = vector.broadcast %82 : vector<8x1xf32> to vector<8x8xf32>
    %84 = arith.subf %80, %83 : vector<8x8xf32>
    %85 = math.exp %84 : vector<8x8xf32>
    %cst_41 = arith.constant dense<0.000000e+00> : vector<8xf32>
    %86 = vector.multi_reduction <add>, %85, %cst_41 [1] : vector<8x8xf32> to vector<8xf32>
    %87 = vector.shape_cast %86 : vector<8xf32> to vector<8x1xf32>
    %88 = vector.broadcast %87 : vector<8x1xf32> to vector<8x8xf32>
    %89 = arith.divf %85, %88 : vector<8x8xf32>
    %90 = arith.truncf %89 : vector<8x8xf32> to vector<8x8xbf16>
    %cst_42 = arith.constant dense<0.000000e+00> : vector<8x16xf32>
    %91 = tpu.matmul %90, %79, %cst_42 {dimension_numbers = #tpu.dot_dimension_numbers<[1], [0], [0], [1], [0, 0, 1, 1], [], []>} : vector<8x8xbf16>, vector<8x16xbf16>, vector<8x16xf32> -> vector<8x16xf32>
    %92 = arith.truncf %91 : vector<8x16xf32> to vector<8x16xbf16>
    %93 = vector.extract_strided_slice %28 {offsets = [32, 0], sizes = [16, 64], strides = [1, 1]} : vector<64x64xbf16> to vector<16x64xbf16>
    %cst_43 = arith.constant dense<0.000000e+00> : vector<8x64xf32>
    %94 = tpu.matmul %92, %93, %cst_43 {dimension_numbers = #tpu.dot_dimension_numbers<[1], [0], [0], [1], [0, 0, 1, 1], [], []>} : vector<8x16xbf16>, vector<16x64xbf16>, vector<8x64xf32> -> vector<8x64xf32>
    %95 = arith.addf %73, %94 : vector<8x64xf32>
    %96 = vector.extract_strided_slice %27 {offsets = [0, 48], sizes = [8, 16], strides = [1, 1]} : vector<8x64xf32> to vector<8x16xf32>
    %97 = arith.truncf %96 : vector<8x16xf32> to vector<8x16xbf16>
    %98 = vector.extract_strided_slice %20 {offsets = [0, 48], sizes = [8, 16], strides = [1, 1]} : vector<8x64xf32> to vector<8x16xf32>
    %99 = arith.truncf %98 : vector<8x16xf32> to vector<8x16xbf16>
    %100 = vector.extract_strided_slice %25 {offsets = [0, 48], sizes = [8, 16], strides = [1, 1]} : vector<8x64xf32> to vector<8x16xf32>
    %101 = arith.truncf %100 : vector<8x16xf32> to vector<8x16xbf16>
    %cst_44 = arith.constant dense<0.000000e+00> : vector<8x8xf32>
    %102 = tpu.matmul %97, %99, %cst_44 {dimension_numbers = #tpu.dot_dimension_numbers<[1], [1], [0], [0], [0, 0, 1, 0], [], []>} : vector<8x16xbf16>, vector<8x16xbf16>, vector<8x8xf32> -> vector<8x8xf32>
    %cst_45 = arith.constant dense<0xFF800000> : vector<8xf32>
    %103 = vector.multi_reduction <maximumf>, %102, %cst_45 [1] : vector<8x8xf32> to vector<8xf32>
    %104 = vector.shape_cast %103 : vector<8xf32> to vector<8x1xf32>
    %105 = vector.broadcast %104 : vector<8x1xf32> to vector<8x8xf32>
    %106 = arith.subf %102, %105 : vector<8x8xf32>
    %107 = math.exp %106 : vector<8x8xf32>
    %cst_46 = arith.constant dense<0.000000e+00> : vector<8xf32>
    %108 = vector.multi_reduction <add>, %107, %cst_46 [1] : vector<8x8xf32> to vector<8xf32>
    %109 = vector.shape_cast %108 : vector<8xf32> to vector<8x1xf32>
    %110 = vector.broadcast %109 : vector<8x1xf32> to vector<8x8xf32>
    %111 = arith.divf %107, %110 : vector<8x8xf32>
    %112 = arith.truncf %111 : vector<8x8xf32> to vector<8x8xbf16>
    %cst_47 = arith.constant dense<0.000000e+00> : vector<8x16xf32>
    %113 = tpu.matmul %112, %101, %cst_47 {dimension_numbers = #tpu.dot_dimension_numbers<[1], [0], [0], [1], [0, 0, 1, 1], [], []>} : vector<8x8xbf16>, vector<8x16xbf16>, vector<8x16xf32> -> vector<8x16xf32>
    %114 = arith.truncf %113 : vector<8x16xf32> to vector<8x16xbf16>
    %115 = vector.extract_strided_slice %28 {offsets = [48, 0], sizes = [16, 64], strides = [1, 1]} : vector<64x64xbf16> to vector<16x64xbf16>
    %cst_48 = arith.constant dense<0.000000e+00> : vector<8x64xf32>
    %116 = tpu.matmul %114, %115, %cst_48 {dimension_numbers = #tpu.dot_dimension_numbers<[1], [0], [0], [1], [0, 0, 1, 1], [], []>} : vector<8x16xbf16>, vector<16x64xbf16>, vector<8x64xf32> -> vector<8x64xf32>
    %117 = arith.addf %95, %116 : vector<8x64xf32>
    %c0_49 = arith.constant 0 : index
    %c0_50 = arith.constant 0 : index
    %118 = vector.load %arg13[%c0_49, %c0_50] : memref<1x64xf32, #tpu.memory_space<vmem>>, vector<1x64xf32>
    %119 = vector.broadcast %118 : vector<1x64xf32> to vector<8x64xf32>
    %120 = arith.addf %117, %119 : vector<8x64xf32>
    %121 = arith.addf %120, %10 : vector<8x64xf32>
    %cst_51 = arith.constant dense<0.000000e+00> : vector<8xf32>
    %122 = vector.multi_reduction <add>, %121, %cst_51 [1] : vector<8x64xf32> to vector<8xf32>
    %123 = vector.shape_cast %122 : vector<8xf32> to vector<8x1xf32>
    %cst_52 = arith.constant 6.400000e+01 : f32
    %124 = vector.broadcast %cst_52 : f32 to vector<8x1xf32>
    %125 = arith.divf %123, %124 : vector<8x1xf32>
    %126 = vector.broadcast %125 : vector<8x1xf32> to vector<8x64xf32>
    %127 = arith.subf %121, %126 : vector<8x64xf32>
    %128 = arith.mulf %127, %127 : vector<8x64xf32>
    %cst_53 = arith.constant dense<0.000000e+00> : vector<8xf32>
    %129 = vector.multi_reduction <add>, %128, %cst_53 [1] : vector<8x64xf32> to vector<8xf32>
    %130 = vector.shape_cast %129 : vector<8xf32> to vector<8x1xf32>
    %cst_54 = arith.constant 6.400000e+01 : f32
    %131 = vector.broadcast %cst_54 : f32 to vector<8x1xf32>
    %132 = arith.divf %130, %131 : vector<8x1xf32>
    %cst_55 = arith.constant 9.99999974E-6 : f32
    %133 = vector.broadcast %cst_55 : f32 to vector<8x1xf32>
    %134 = arith.addf %132, %133 : vector<8x1xf32>
    %135 = math.rsqrt %134 : vector<8x1xf32>
    %136 = vector.broadcast %135 : vector<8x1xf32> to vector<8x64xf32>
    %137 = arith.mulf %127, %136 : vector<8x64xf32>
    %c0_56 = arith.constant 0 : index
    %c0_57 = arith.constant 0 : index
    %138 = vector.load %arg14[%c0_56, %c0_57] : memref<1x64xf32, #tpu.memory_space<vmem>>, vector<1x64xf32>
    %139 = vector.broadcast %138 : vector<1x64xf32> to vector<8x64xf32>
    %140 = arith.mulf %137, %139 : vector<8x64xf32>
    %c0_58 = arith.constant 0 : index
    %c0_59 = arith.constant 0 : index
    %141 = vector.load %arg15[%c0_58, %c0_59] : memref<1x64xf32, #tpu.memory_space<vmem>>, vector<1x64xf32>
    %142 = vector.broadcast %141 : vector<1x64xf32> to vector<8x64xf32>
    %143 = arith.addf %140, %142 : vector<8x64xf32>
    %c0_60 = arith.constant 0 : index
    %c0_61 = arith.constant 0 : index
    %c0_62 = arith.constant 0 : index
    %144 = vector.load %arg16[%c0_60, %c0_61, %c0_62] : memref<1x8x64xf32, #tpu.memory_space<vmem>>, vector<1x8x64xf32>
    %145 = vector.shape_cast %144 : vector<1x8x64xf32> to vector<8x64xf32>
    %146 = vector.shape_cast %143 : vector<8x64xf32> to vector<1x8x64xf32>
    tpu.vector_store %arg16[%c0_60, %c0_61, %c0_62], %146 {strides = array<i32>} : memref<1x8x64xf32, #tpu.memory_space<vmem>>, vector<1x8x64xf32>,
    return
  }
  func.func @transform_0(%arg0: i32, %arg1: i32) -> (i32, i32, i32) {
    %c0_i32 = arith.constant 0 : i32
    %c0_i32_0 = arith.constant 0 : i32
    return %arg0, %arg1, %c0_i32 : i32, i32, i32
  }
  func.func @transform_1(%arg0: i32, %arg1: i32) -> (i32, i32, i32) {
    %c0_i32 = arith.constant 0 : i32
    %c0_i32_0 = arith.constant 0 : i32
    %c0_i32_1 = arith.constant 0 : i32
    return %arg0, %c0_i32, %c0_i32_0 : i32, i32, i32
  }
  func.func @transform_2(%arg0: i32, %arg1: i32) -> (i32, i32, i32) {
    %c0_i32 = arith.constant 0 : i32
    %c0_i32_0 = arith.constant 0 : i32
    %c0_i32_1 = arith.constant 0 : i32
    return %arg0, %c0_i32, %c0_i32_0 : i32, i32, i32
  }
  func.func @transform_3(%arg0: i32, %arg1: i32) -> (i32, i32, i32) {
    %c0_i32 = arith.constant 0 : i32
    %c0_i32_0 = arith.constant 0 : i32
    return %arg0, %arg1, %c0_i32 : i32, i32, i32
  }
  func.func @transform_4(%arg0: i32, %arg1: i32) -> (i32, i32) {
    %c0_i32 = arith.constant 0 : i32
    %c0_i32_0 = arith.constant 0 : i32
    %c0_i32_1 = arith.constant 0 : i32
    return %c0_i32, %c0_i32_0 : i32, i32
  }
  func.func @transform_5(%arg0: i32, %arg1: i32) -> (i32, i32) {
    %c0_i32 = arith.constant 0 : i32
    %c0_i32_0 = arith.constant 0 : i32
    %c0_i32_1 = arith.constant 0 : i32
    return %c0_i32, %c0_i32_0 : i32, i32
  }
  func.func @transform_6(%arg0: i32, %arg1: i32) -> (i32, i32) {
    %c0_i32 = arith.constant 0 : i32
    %c0_i32_0 = arith.constant 0 : i32
    %c0_i32_1 = arith.constant 0 : i32
    return %c0_i32, %c0_i32_0 : i32, i32
  }
  func.func @transform_7(%arg0: i32, %arg1: i32) -> (i32, i32) {
    %c0_i32 = arith.constant 0 : i32
    %c0_i32_0 = arith.constant 0 : i32
    %c0_i32_1 = arith.constant 0 : i32
    return %c0_i32, %c0_i32_0 : i32, i32
  }
  func.func @transform_8(%arg0: i32, %arg1: i32) -> (i32, i32) {
    %c0_i32 = arith.constant 0 : i32
    %c0_i32_0 = arith.constant 0 : i32
    %c0_i32_1 = arith.constant 0 : i32
    return %c0_i32, %c0_i32_0 : i32, i32
  }
  func.func @transform_9(%arg0: i32, %arg1: i32) -> (i32, i32) {
    %c0_i32 = arith.constant 0 : i32
    %c0_i32_0 = arith.constant 0 : i32
    %c0_i32_1 = arith.constant 0 : i32
    return %c0_i32, %c0_i32_0 : i32, i32
  }
  func.func @transform_10(%arg0: i32, %arg1: i32) -> (i32, i32) {
    %c0_i32 = arith.constant 0 : i32
    %c0_i32_0 = arith.constant 0 : i32
    %c0_i32_1 = arith.constant 0 : i32
    return %c0_i32, %c0_i32_0 : i32, i32
  }
  func.func @transform_11(%arg0: i32, %arg1: i32) -> (i32, i32) {
    %c0_i32 = arith.constant 0 : i32
    %c0_i32_0 = arith.constant 0 : i32
    %c0_i32_1 = arith.constant 0 : i32
    return %c0_i32, %c0_i32_0 : i32, i32
  }
  func.func @transform_12(%arg0: i32, %arg1: i32) -> (i32, i32) {
    %c0_i32 = arith.constant 0 : i32
    %c0_i32_0 = arith.constant 0 : i32
    %c0_i32_1 = arith.constant 0 : i32
    return %c0_i32, %c0_i32_0 : i32, i32
  }
  func.func @transform_13(%arg0: i32, %arg1: i32) -> (i32, i32) {
    %c0_i32 = arith.constant 0 : i32
    %c0_i32_0 = arith.constant 0 : i32
    %c0_i32_1 = arith.constant 0 : i32
    return %c0_i32, %c0_i32_0 : i32, i32
  }
  func.func @transform_14(%arg0: i32, %arg1: i32) -> (i32, i32, i32) {
    %c0_i32 = arith.constant 0 : i32
    %c0_i32_0 = arith.constant 0 : i32
    return %arg0, %arg1, %c0_i32 : i32, i32, i32
  }
}

</mosaic_0001>

<llo_original>
// kernel: tpu_custom_call.1
$region0: #{tpu_custom_call.1}
  #allocation0 [shape = 'u32[]', space=smem, size = 0x4, offset = 0x4, fixed_abs, tag = 'smem constant byte address 0x4 - core index']
  #allocation1 [shape = 'u32[144,128]{1,0:T(1,128)}', space=vmem, size = 0x12000, scoped, tag = 'internal scratch']
  %s0 = inlined_call_operand.hbm [shape: f32[2,8,64], index: 0, kind: input, shape index: {}]
  %s1 = inlined_call_operand.hbm [shape: f32[2,8,64], index: 1, kind: input, shape index: {}]
  %s2 = inlined_call_operand.hbm [shape: f32[2,8,64], index: 2, kind: input, shape index: {}]
  %s3 = inlined_call_operand.hbm [shape: f32[2,8,64], index: 3, kind: input, shape index: {}]
  %s4 = inlined_call_operand.hbm [shape: bf16[64,64], index: 4, kind: input, shape index: {}]
  %s5 = inlined_call_operand.vmem [shape: f32[1,64], index: 5, kind: input, shape index: {}]
  %s6 = inlined_call_operand.hbm [shape: bf16[64,64], index: 6, kind: input, shape index: {}]
  %s7 = inlined_call_operand.vmem [shape: f32[1,64], index: 7, kind: input, shape index: {}]
  %s8 = inlined_call_operand.hbm [shape: bf16[64,64], index: 8, kind: input, shape index: {}]
  %s9 = inlined_call_operand.vmem [shape: f32[1,64], index: 9, kind: input, shape index: {}]
  %s10 = inlined_call_operand.hbm [shape: bf16[64,64], index: 10, kind: input, shape index: {}]
  %s11 = inlined_call_operand.vmem [shape: f32[1,64], index: 11, kind: input, shape index: {}]
  %s12 = inlined_call_operand.vmem [shape: f32[1,64], index: 12, kind: input, shape index: {}]
  %s13 = inlined_call_operand.vmem [shape: f32[1,64], index: 13, kind: input, shape index: {}]
  %s14 = inlined_call_operand.hbm [shape: f32[2,8,64], index: 14, kind: output, shape index: {}]
  %s15 = sld [smem:[#allocation0]]
  $region121: #{tpu_custom_call.1} parent=0
    _
  %s17 = ssub.s32 1, %s15
  %s18 = scalar_select 0, %s17, %s15
  $region1: #{tpu_custom_call.1} parent=0
    #allocation2 [shape = 'u8[8192]{0}', space=vmem, size = 0x2000, scoped, tag = 'input window, operand 0']
    #allocation3 [shape = 's32[2]{0}', space=sflag, size = 0x8, scoped, tag = 'scoped memory for tpu_custom_call.1']
    #allocation4 [shape = 's32[2]{0}', space=sflag, size = 0x8, scoped, tag = 'scoped memory for tpu_custom_call.1']
    #allocation5 [shape = 'u8[8192]{0}', space=vmem, size = 0x2000, scoped, tag = 'input window, operand 1']
    #allocation6 [shape = 's32[2]{0}', space=sflag, size = 0x8, scoped, tag = 'scoped memory for tpu_custom_call.1']
    #allocation7 [shape = 'u8[8192]{0}', space=vmem, size = 0x2000, scoped, tag = 'input window, operand 2']
    #allocation8 [shape = 'u8[8192]{0}', space=vmem, size = 0x2000, scoped, tag = 'input window, operand 3']
    #allocation9 [shape = 's32[2]{0}', space=sflag, size = 0x8, scoped, tag = 'scoped memory for tpu_custom_call.1']
    #allocation10 [shape = 'u8[16384]{0}', space=vmem, size = 0x4000, scoped, tag = 'input window, operand 4, single buffered']
    #allocation11 [shape = 'u8[16384]{0}', space=vmem, size = 0x4000, scoped, tag = 'input window, operand 6, single buffered']
    #allocation12 [shape = 's32[1]{0}', space=sflag, size = 0x4, scoped, tag = 'scoped memory for tpu_custom_call.1']
    #allocation13 [shape = 'u8[16384]{0}', space=vmem, size = 0x4000, scoped, tag = 'input window, operand 8, single buffered']
    #allocation14 [shape = 'u8[16384]{0}', space=vmem, size = 0x4000, scoped, tag = 'input window, operand 10, single buffered']
    #allocation15 [shape = 's32[1]{0}', space=sflag, size = 0x4, scoped, tag = 'scoped memory for tpu_custom_call.1']
    #allocation16 [shape = 'u8[8192]{0}', space=vmem, size = 0x2000, scoped, tag = 'output window, operand 0']
    %19 = vsyncpa [#allocation3], 0
    %s20 = scalar_lea.sflag [#allocation3], 1
    %21 = vsyncpa %s20, 0
    %22 = vsyncpa [#allocation6], 0
    %s23 = scalar_lea.sflag [#allocation6], 1
    %24 = vsyncpa %s23, 0
    %25 = vsyncpa [#allocation9], 0
    %s26 = scalar_lea.sflag [#allocation9], 1
    %27 = vsyncpa %s26, 0
    %28 = vsyncpa [#allocation12], 0
    %29 = vsyncpa [#allocation15], 0
    %30 = vsyncpa [#allocation4], 0
    %s31 = scalar_lea.sflag [#allocation4], 1
    %32 = vsyncpa %s31, 0
    loop: start=0, step=1, limit=4
    $region2: #{tpu_custom_call.1} parent=1 // loop_pre_header
      _
    $region3: #{tpu_custom_call.1} parent=1 // loop_header
      %s34 = sphi 0, %s38
      %p35 = scmp.ge.s32.totalorder %s34, 4
      %s41 = sphi 0, %s53
      %s42 = sphi 0, %s49
      %s43 = sphi 0, %s41
      %s44 = sphi 0, %s42
      %s45 = sphi 0, %s43
      %s46 = sphi 0, %s44
      %s58 = sphi 0, %s60
      %s61 = sphi 0, %s58
      %s62 = sphi 0, %s61
      %s78 = sphi 0, %s62
      %s84 = sphi 0, %s86
      %s87 = sphi 0, %s84
      %s88 = sphi 0, %s87
      %s104 = sphi 0, %s88
      %s110 = sphi 0, %s112
      %s113 = sphi 0, %s110
      %s114 = sphi 0, %s113
      %s130 = sphi 0, %s114
      %s138 = sphi 0, %s140
      %s141 = sphi 0, %s138
      %s142 = sphi 0, %s141
      %s158 = sphi 0, %s142
      %s162 = sphi 0, %s162
      %s164 = sphi 0, %s162
      %s165 = sphi 0, %s164
      %s179 = sphi 0, %s165
      %s183 = sphi 0, %s183
      %s185 = sphi 0, %s183
      %s186 = sphi 0, %s185
      %s200 = sphi 0, %s186
      %s204 = sphi 0, %s204
      %s206 = sphi 0, %s204
      %s207 = sphi 0, %s206
      %s221 = sphi 0, %s207
      %s225 = sphi 0, %s225
      %s227 = sphi 0, %s225
      %s228 = sphi 0, %s227
      %s242 = sphi 0, %s228
      %s246 = sphi 0, %s246
      %s248 = sphi 0, %s246
      %s249 = sphi 0, %s248
      %s263 = sphi 0, %s249
      %s267 = sphi 0, %s267
      %s269 = sphi 0, %s267
      %s270 = sphi 0, %s269
      %s284 = sphi 0, %s270
      %s288 = sphi 0, %s288
      %s290 = sphi 0, %s288
      %s291 = sphi 0, %s290
      %s305 = sphi 0, %s291
      %s309 = sphi 0, %s309
      %s311 = sphi 0, %s309
      %s312 = sphi 0, %s311
      %s326 = sphi 0, %s312
      %s330 = sphi 0, %s330
      %s332 = sphi 0, %s330
      %s333 = sphi 0, %s332
      %s347 = sphi 0, %s333
      %s351 = sphi 0, %s351
      %s353 = sphi 0, %s351
      %s354 = sphi 0, %s353
      %s368 = sphi 0, %s354
      %s376 = sphi 0, %s378
      %s379 = sphi 0, %s376
      %s380 = sphi 0, %s379
      %s396 = sphi 0, %s380
    $region4: #{tpu_custom_call.1} parent=1 // loop_header_branch
      %37 = sbr.rel (%p35) target = $region8
    $region5: #{tpu_custom_call.1} parent=1 // loop_body
      %s39 = ssub.s32 %s34, 1
      %s40 = ssub.s32 %s34, 2
      %s47 = sadd.s32 1, %s42
      %p48 = scmp.ge.s32.totalorder %s47, 1
      %s49 = scalar_select %p48, 0, %s47
      %s50 = sadd.s32 1, %s41
      %s51 = scalar_select %p48, %s50, %s41
      %p52 = scmp.ge.s32.totalorder %s51, 2
      %s53 = scalar_select %p52, 0, %s51
      %s54 = ssub.s32 %s41, %s53
      %s55 = ssub.s32 %s42, %s49
      %s56 = sor.u32 %s54, %s55
      %p57 = scmp.eq.s32.totalorder %s56, 0
      %s59 = sadd.s32 %s58, 1
      %s60 = scalar_select %p57, %s58, %s59
      %p63 = pneg %p57
      %p64 = scmp.eq.s32.totalorder %s34, 1
      %p65 = por %p63, %p64
      %p66 = scmp.ne.s32.totalorder %s58, %s61
      %p67 = scmp.eq.s32.totalorder %s34, 0
      %p68 = por %p66, %p67
      %p69 = scmp.ne.s32.totalorder %s58, %s61
      %p70 = scmp.eq.s32.totalorder %s39, 1
      %p71 = por %p69, %p70
      %p72 = scmp.ne.s32.totalorder %s61, %s62
      %p73 = scmp.eq.s32.totalorder %s39, 0
      %p74 = por %p72, %p73
      %p75 = scmp.ne.s32.totalorder %s61, %s62
      %p76 = scmp.eq.s32.totalorder %s40, 1
      %p77 = por %p75, %p76
      %p79 = scmp.ne.s32.totalorder %s62, %s78
      %p80 = scmp.eq.s32.totalorder %s40, 0
      %p81 = por %p79, %p80
      %s82 = ssub.s32 %s41, %s53
      %p83 = scmp.eq.s32.totalorder %s82, 0
      %s85 = sadd.s32 %s84, 1
      %s86 = scalar_select %p83, %s84, %s85
      %p89 = pneg %p83
      %p90 = scmp.eq.s32.totalorder %s34, 1
      %p91 = por %p89, %p90
      %p92 = scmp.ne.s32.totalorder %s84, %s87
      %p93 = scmp.eq.s32.totalorder %s34, 0
      %p94 = por %p92, %p93
      %p95 = scmp.ne.s32.totalorder %s84, %s87
      %p96 = scmp.eq.s32.totalorder %s39, 1
      %p97 = por %p95, %p96
      %p98 = scmp.ne.s32.totalorder %s87, %s88
      %p99 = scmp.eq.s32.totalorder %s39, 0
      %p100 = por %p98, %p99
      %p101 = scmp.ne.s32.totalorder %s87, %s88
      %p102 = scmp.eq.s32.totalorder %s40, 1
      %p103 = por %p101, %p102
      %p105 = scmp.ne.s32.totalorder %s88, %s104
      %p106 = scmp.eq.s32.totalorder %s40, 0
      %p107 = por %p105, %p106
      %s108 = ssub.s32 %s41, %s53
      %p109 = scmp.eq.s32.totalorder %s108, 0
      %s111 = sadd.s32 %s110, 1
      %s112 = scalar_select %p109, %s110, %s111
      %p115 = pneg %p109
      %p116 = scmp.eq.s32.totalorder %s34, 1
      %p117 = por %p115, %p116
      %p118 = scmp.ne.s32.totalorder %s110, %s113
      %p119 = scmp.eq.s32.totalorder %s34, 0
      %p120 = por %p118, %p119
      %p121 = scmp.ne.s32.totalorder %s110, %s113
      %p122 = scmp.eq.s32.totalorder %s39, 1
      %p123 = por %p121, %p122
      %p124 = scmp.ne.s32.totalorder %s113, %s114
      %p125 = scmp.eq.s32.totalorder %s39, 0
      %p126 = por %p124, %p125
      %p127 = scmp.ne.s32.totalorder %s113, %s114
      %p128 = scmp.eq.s32.totalorder %s40, 1
      %p129 = por %p127, %p128
      %p131 = scmp.ne.s32.totalorder %s114, %s130
      %p132 = scmp.eq.s32.totalorder %s40, 0
      %p133 = por %p131, %p132
      %s134 = ssub.s32 %s41, %s53
      %s135 = ssub.s32 %s42, %s49
      %s136 = sor.u32 %s134, %s135
      %p137 = scmp.eq.s32.totalorder %s136, 0
      %s139 = sadd.s32 %s138, 1
      %s140 = scalar_select %p137, %s138, %s139
      %p143 = pneg %p137
      %p144 = scmp.eq.s32.totalorder %s34, 1
      %p145 = por %p143, %p144
      %p146 = scmp.ne.s32.totalorder %s138, %s141
      %p147 = scmp.eq.s32.totalorder %s34, 0
      %p148 = por %p146, %p147
      %p149 = scmp.ne.s32.totalorder %s138, %s141
      %p150 = scmp.eq.s32.totalorder %s39, 1
      %p151 = por %p149, %p150
      %p152 = scmp.ne.s32.totalorder %s141, %s142
      %p153 = scmp.eq.s32.totalorder %s39, 0
      %p154 = por %p152, %p153
      %p155 = scmp.ne.s32.totalorder %s141, %s142
      %p156 = scmp.eq.s32.totalorder %s40, 1
      %p157 = por %p155, %p156
      %p159 = scmp.ne.s32.totalorder %s142, %s158
      %p160 = scmp.eq.s32.totalorder %s40, 0
      %p161 = por %p159, %p160
      %s163 = sadd.s32 %s162, 1
      %p166 = scmp.eq.s32.totalorder %s34, 1
      %p167 = scmp.ne.s32.totalorder %s162, %s164
      %p168 = scmp.eq.s32.totalorder %s34, 0
      %p169 = por %p167, %p168
      %p170 = scmp.ne.s32.totalorder %s162, %s164
      %p171 = scmp.eq.s32.totalorder %s39, 1
      %p172 = por %p170, %p171
      %p173 = scmp.ne.s32.totalorder %s164, %s165
      %p174 = scmp.eq.s32.totalorder %s39, 0
      %p175 = por %p173, %p174
      %p176 = scmp.ne.s32.totalorder %s164, %s165
      %p177 = scmp.eq.s32.totalorder %s40, 1
      %p178 = por %p176, %p177
      %p180 = scmp.ne.s32.totalorder %s165, %s179
      %p181 = scmp.eq.s32.totalorder %s40, 0
      %p182 = por %p180, %p181
      %s184 = sadd.s32 %s183, 1
      %p187 = scmp.eq.s32.totalorder %s34, 1
      %p188 = scmp.ne.s32.totalorder %s183, %s185
      %p189 = scmp.eq.s32.totalorder %s34, 0
      %p190 = por %p188, %p189
      %p191 = scmp.ne.s32.totalorder %s183, %s185
      %p192 = scmp.eq.s32.totalorder %s39, 1
      %p193 = por %p191, %p192
      %p194 = scmp.ne.s32.totalorder %s185, %s186
      %p195 = scmp.eq.s32.totalorder %s39, 0
      %p196 = por %p194, %p195
      %p197 = scmp.ne.s32.totalorder %s185, %s186
      %p198 = scmp.eq.s32.totalorder %s40, 1
      %p199 = por %p197, %p198
      %p201 = scmp.ne.s32.totalorder %s186, %s200
      %p202 = scmp.eq.s32.totalorder %s40, 0
      %p203 = por %p201, %p202
      %s205 = sadd.s32 %s204, 1
      %p208 = scmp.eq.s32.totalorder %s34, 1
      %p209 = scmp.ne.s32.totalorder %s204, %s206
      %p210 = scmp.eq.s32.totalorder %s34, 0
      %p211 = por %p209, %p210
      %p212 = scmp.ne.s32.totalorder %s204, %s206
      %p213 = scmp.eq.s32.totalorder %s39, 1
      %p214 = por %p212, %p213
      %p215 = scmp.ne.s32.totalorder %s206, %s207
      %p216 = scmp.eq.s32.totalorder %s39, 0
      %p217 = por %p215, %p216
      %p218 = scmp.ne.s32.totalorder %s206, %s207
      %p219 = scmp.eq.s32.totalorder %s40, 1
      %p220 = por %p218, %p219
      %p222 = scmp.ne.s32.totalorder %s207, %s221
      %p223 = scmp.eq.s32.totalorder %s40, 0
      %p224 = por %p222, %p223
      %s226 = sadd.s32 %s225, 1
      %p229 = scmp.eq.s32.totalorder %s34, 1
      %p230 = scmp.ne.s32.totalorder %s225, %s227
      %p231 = scmp.eq.s32.totalorder %s34, 0
      %p232 = por %p230, %p231
      %p233 = scmp.ne.s32.totalorder %s225, %s227
      %p234 = scmp.eq.s32.totalorder %s39, 1
      %p235 = por %p233, %p234
      %p236 = scmp.ne.s32.totalorder %s227, %s228
      %p237 = scmp.eq.s32.totalorder %s39, 0
      %p238 = por %p236, %p237
      %p239 = scmp.ne.s32.totalorder %s227, %s228
      %p240 = scmp.eq.s32.totalorder %s40, 1
      %p241 = por %p239, %p240
      %p243 = scmp.ne.s32.totalorder %s228, %s242
      %p244 = scmp.eq.s32.totalorder %s40, 0
      %p245 = por %p243, %p244
      %s247 = sadd.s32 %s246, 1
      %p250 = scmp.eq.s32.totalorder %s34, 1
      %p251 = scmp.ne.s32.totalorder %s246, %s248
      %p252 = scmp.eq.s32.totalorder %s34, 0
      %p253 = por %p251, %p252
      %p254 = scmp.ne.s32.totalorder %s246, %s248
      %p255 = scmp.eq.s32.totalorder %s39, 1
      %p256 = por %p254, %p255
      %p257 = scmp.ne.s32.totalorder %s248, %s249
      %p258 = scmp.eq.s32.totalorder %s39, 0
      %p259 = por %p257, %p258
      %p260 = scmp.ne.s32.totalorder %s248, %s249
      %p261 = scmp.eq.s32.totalorder %s40, 1
      %p262 = por %p260, %p261
      %p264 = scmp.ne.s32.totalorder %s249, %s263
      %p265 = scmp.eq.s32.totalorder %s40, 0
      %p266 = por %p264, %p265
      %s268 = sadd.s32 %s267, 1
      %p271 = scmp.eq.s32.totalorder %s34, 1
      %p272 = scmp.ne.s32.totalorder %s267, %s269
      %p273 = scmp.eq.s32.totalorder %s34, 0
      %p274 = por %p272, %p273
      %p275 = scmp.ne.s32.totalorder %s267, %s269
      %p276 = scmp.eq.s32.totalorder %s39, 1
      %p277 = por %p275, %p276
      %p278 = scmp.ne.s32.totalorder %s269, %s270
      %p279 = scmp.eq.s32.totalorder %s39, 0
      %p280 = por %p278, %p279
      %p281 = scmp.ne.s32.totalorder %s269, %s270
      %p282 = scmp.eq.s32.totalorder %s40, 1
      %p283 = por %p281, %p282
      %p285 = scmp.ne.s32.totalorder %s270, %s284
      %p286 = scmp.eq.s32.totalorder %s40, 0
      %p287 = por %p285, %p286
      %s289 = sadd.s32 %s288, 1
      %p292 = scmp.eq.s32.totalorder %s34, 1
      %p293 = scmp.ne.s32.totalorder %s288, %s290
      %p294 = scmp.eq.s32.totalorder %s34, 0
      %p295 = por %p293, %p294
      %p296 = scmp.ne.s32.totalorder %s288, %s290
      %p297 = scmp.eq.s32.totalorder %s39, 1
      %p298 = por %p296, %p297
      %p299 = scmp.ne.s32.totalorder %s290, %s291
      %p300 = scmp.eq.s32.totalorder %s39, 0
      %p301 = por %p299, %p300
      %p302 = scmp.ne.s32.totalorder %s290, %s291
      %p303 = scmp.eq.s32.totalorder %s40, 1
      %p304 = por %p302, %p303
      %p306 = scmp.ne.s32.totalorder %s291, %s305
      %p307 = scmp.eq.s32.totalorder %s40, 0
      %p308 = por %p306, %p307
      %s310 = sadd.s32 %s309, 1
      %p313 = scmp.eq.s32.totalorder %s34, 1
      %p314 = scmp.ne.s32.totalorder %s309, %s311
      %p315 = scmp.eq.s32.totalorder %s34, 0
      %p316 = por %p314, %p315
      %p317 = scmp.ne.s32.totalorder %s309, %s311
      %p318 = scmp.eq.s32.totalorder %s39, 1
      %p319 = por %p317, %p318
      %p320 = scmp.ne.s32.totalorder %s311, %s312
      %p321 = scmp.eq.s32.totalorder %s39, 0
      %p322 = por %p320, %p321
      %p323 = scmp.ne.s32.totalorder %s311, %s312
      %p324 = scmp.eq.s32.totalorder %s40, 1
      %p325 = por %p323, %p324
      %p327 = scmp.ne.s32.totalorder %s312, %s326
      %p328 = scmp.eq.s32.totalorder %s40, 0
      %p329 = por %p327, %p328
      %s331 = sadd.s32 %s330, 1
      %p334 = scmp.eq.s32.totalorder %s34, 1
      %p335 = scmp.ne.s32.totalorder %s330, %s332
      %p336 = scmp.eq.s32.totalorder %s34, 0
      %p337 = por %p335, %p336
      %p338 = scmp.ne.s32.totalorder %s330, %s332
      %p339 = scmp.eq.s32.totalorder %s39, 1
      %p340 = por %p338, %p339
      %p341 = scmp.ne.s32.totalorder %s332, %s333
      %p342 = scmp.eq.s32.totalorder %s39, 0
      %p343 = por %p341, %p342
      %p344 = scmp.ne.s32.totalorder %s332, %s333
      %p345 = scmp.eq.s32.totalorder %s40, 1
      %p346 = por %p344, %p345
      %p348 = scmp.ne.s32.totalorder %s333, %s347
      %p349 = scmp.eq.s32.totalorder %s40, 0
      %p350 = por %p348, %p349
      %s352 = sadd.s32 %s351, 1
      %p355 = scmp.eq.s32.totalorder %s34, 1
      %p356 = scmp.ne.s32.totalorder %s351, %s353
      %p357 = scmp.eq.s32.totalorder %s34, 0
      %p358 = por %p356, %p357
      %p359 = scmp.ne.s32.totalorder %s351, %s353
      %p360 = scmp.eq.s32.totalorder %s39, 1
      %p361 = por %p359, %p360
      %p362 = scmp.ne.s32.totalorder %s353, %s354
      %p363 = scmp.eq.s32.totalorder %s39, 0
      %p364 = por %p362, %p363
      %p365 = scmp.ne.s32.totalorder %s353, %s354
      %p366 = scmp.eq.s32.totalorder %s40, 1
      %p367 = por %p365, %p366
      %p369 = scmp.ne.s32.totalorder %s354, %s368
      %p370 = scmp.eq.s32.totalorder %s40, 0
      %p371 = por %p369, %p370
      %s372 = ssub.s32 %s41, %s53
      %s373 = ssub.s32 %s42, %s49
      %s374 = sor.u32 %s372, %s373
      %p375 = scmp.eq.s32.totalorder %s374, 0
      %s377 = sadd.s32 %s376, 1
      %s378 = scalar_select %p375, %s376, %s377
      %p381 = pneg %p375
      %p382 = scmp.eq.s32.totalorder %s34, 1
      %p383 = por %p381, %p382
      %p384 = scmp.ne.s32.totalorder %s376, %s379
      %p385 = scmp.eq.s32.totalorder %s34, 0
      %p386 = por %p384, %p385
      %p387 = scmp.ne.s32.totalorder %s376, %s379
      %p388 = scmp.eq.s32.totalorder %s39, 1
      %p389 = por %p387, %p388
      %p390 = scmp.ne.s32.totalorder %s379, %s380
      %p391 = scmp.eq.s32.totalorder %s39, 0
      %p392 = por %p390, %p391
      %p393 = scmp.ne.s32.totalorder %s379, %s380
      %p394 = scmp.eq.s32.totalorder %s40, 1
      %p395 = por %p393, %p394
      %p397 = scmp.ne.s32.totalorder %s380, %s396
      %p398 = scmp.eq.s32.totalorder %s40, 0
      %p399 = por %p397, %p398
      %p400 = scmp.le.s32.totalorder 1, %s34
      %p401 = scmp.lt.s32.totalorder %s34, 3
      %p402 = pnand %p400, %p401
      %p403 = pneg %p402
      // Predicated region
      $region9: #{tpu_custom_call.1} parent=5 // pred_check
        _
      $region10: #{tpu_custom_call.1} parent=5 // pred_check_branch
        %405 = sbr.rel (%p402) target = $region12
      $region11: #{tpu_custom_call.1} parent=5 // pred_region
        %s406 = ssub.s32 %s34, 1
        // Predicated region
        $region13: #{tpu_custom_call.1} parent=11 // pred_check
          %p407 = pneg %p175
        $region14: #{tpu_custom_call.1} parent=11 // pred_check_branch
          %409 = sbr.rel (%p407) target = $region16
        $region15: #{tpu_custom_call.1} parent=11 // pred_region
          %s411 = ssub.s32 512, 512
          %412 = vsyncadd [#allocation9], %s411
          %s413 = sshll.u32 [#allocation10], 4
          %s414 = int_to_ptr.vmem [resolvable:$true] %s413
          %419 = dma.hbm_to_vmem [thread:$0]  %s4, 512, %s414, [#allocation9], 64, 64, 4
        $region16: #{tpu_custom_call.1} parent=11 // pred_fallthru
          _
        // Predicated region
        $region17: #{tpu_custom_call.1} parent=11 // pred_check
          %p420 = pneg %p196
        $region18: #{tpu_custom_call.1} parent=11 // pred_check_branch
          %422 = sbr.rel (%p420) target = $region20
        $region19: #{tpu_custom_call.1} parent=11 // pred_region
          _
        $region20: #{tpu_custom_call.1} parent=11 // pred_fallthru
          _
        // Predicated region
        $region21: #{tpu_custom_call.1} parent=11 // pred_check
          %p423 = pneg %p217
        $region22: #{tpu_custom_call.1} parent=11 // pred_check_branch
          %425 = sbr.rel (%p423) target = $region24
        $region23: #{tpu_custom_call.1} parent=11 // pred_region
          %s427 = ssub.s32 512, 512
          %428 = vsyncadd [#allocation12], %s427
          %s429 = sshll.u32 [#allocation11], 4
          %s430 = int_to_ptr.vmem [resolvable:$true] %s429
          %435 = dma.hbm_to_vmem [thread:$0]  %s6, 512, %s430, [#allocation12], 64, 64, 4
        $region24: #{tpu_custom_call.1} parent=11 // pred_fallthru
          _
        // Predicated region
        $region25: #{tpu_custom_call.1} parent=11 // pred_check
          %p436 = pneg %p238
        $region26: #{tpu_custom_call.1} parent=11 // pred_check_branch
          %438 = sbr.rel (%p436) target = $region28
        $region27: #{tpu_custom_call.1} parent=11 // pred_region
          _
        $region28: #{tpu_custom_call.1} parent=11 // pred_fallthru
          _
        // Predicated region
        $region29: #{tpu_custom_call.1} parent=11 // pred_check
          %p439 = pneg %p259
        $region30: #{tpu_custom_call.1} parent=11 // pred_check_branch
          %441 = sbr.rel (%p439) target = $region32
        $region31: #{tpu_custom_call.1} parent=11 // pred_region
          %s443 = ssub.s32 512, 512
          %444 = vsyncadd [#allocation12], %s443
          %s445 = sshll.u32 [#allocation13], 4
          %s446 = int_to_ptr.vmem [resolvable:$true] %s445
          %451 = dma.hbm_to_vmem [thread:$0]  %s8, 512, %s446, [#allocation12], 64, 64, 4
        $region32: #{tpu_custom_call.1} parent=11 // pred_fallthru
          _
        // Predicated region
        $region33: #{tpu_custom_call.1} parent=11 // pred_check
          %p452 = pneg %p280
        $region34: #{tpu_custom_call.1} parent=11 // pred_check_branch
          %454 = sbr.rel (%p452) target = $region36
        $region35: #{tpu_custom_call.1} parent=11 // pred_region
          _
        $region36: #{tpu_custom_call.1} parent=11 // pred_fallthru
          _
        // Predicated region
        $region37: #{tpu_custom_call.1} parent=11 // pred_check
          %p455 = pneg %p301
        $region38: #{tpu_custom_call.1} parent=11 // pred_check_branch
          %457 = sbr.rel (%p455) target = $region40
        $region39: #{tpu_custom_call.1} parent=11 // pred_region
          %s459 = ssub.s32 512, 512
          %460 = vsyncadd [#allocation15], %s459
          %s461 = sshll.u32 [#allocation14], 4
          %s462 = int_to_ptr.vmem [resolvable:$true] %s461
          %467 = dma.hbm_to_vmem [thread:$0]  %s10, 512, %s462, [#allocation15], 64, 64, 4
        $region40: #{tpu_custom_call.1} parent=11 // pred_fallthru
          _
        // Predicated region
        $region41: #{tpu_custom_call.1} parent=11 // pred_check
          %p468 = pneg %p322
        $region42: #{tpu_custom_call.1} parent=11 // pred_check_branch
          %470 = sbr.rel (%p468) target = $region44
        $region43: #{tpu_custom_call.1} parent=11 // pred_region
          _
        $region44: #{tpu_custom_call.1} parent=11 // pred_fallthru
          _
        // Predicated region
        $region45: #{tpu_custom_call.1} parent=11 // pred_check
          %p471 = pneg %p343
        $region46: #{tpu_custom_call.1} parent=11 // pred_check_branch
          %473 = sbr.rel (%p471) target = $region48
        $region47: #{tpu_custom_call.1} parent=11 // pred_region
          _
        $region48: #{tpu_custom_call.1} parent=11 // pred_fallthru
          _
        // Predicated region
        $region49: #{tpu_custom_call.1} parent=11 // pred_check
          %p474 = pneg %p364
        $region50: #{tpu_custom_call.1} parent=11 // pred_check_branch
          %476 = sbr.rel (%p474) target = $region52
        $region51: #{tpu_custom_call.1} parent=11 // pred_region
          _
        $region52: #{tpu_custom_call.1} parent=11 // pred_fallthru
          _
      $region12: #{tpu_custom_call.1} parent=5 // pred_fallthru
        _
      %p477 = scmp.lt.s32.totalorder %s34, 2
      // Predicated region
      $region53: #{tpu_custom_call.1} parent=5 // pred_check
        %p478 = pneg %p477
      $region54: #{tpu_custom_call.1} parent=5 // pred_check_branch
        %480 = sbr.rel (%p478) target = $region56
      $region55: #{tpu_custom_call.1} parent=5 // pred_region
        // Predicated region
        $region57: #{tpu_custom_call.1} parent=55 // pred_check
          %p481 = pneg %p68
        $region58: #{tpu_custom_call.1} parent=55 // pred_check_branch
          %483 = sbr.rel (%p481) target = $region60
        $region59: #{tpu_custom_call.1} parent=55 // pred_region
          %s484 = sand.u32 %s58, 1
          %s485 = scalar_lea.sflag [#allocation3], %s484
          %s486 = sand.u32 %s58, 1
          %s487 = smul.addr %s486, 8
          %s488 = scalar_lea.vmem [#allocation2], %s487
          %s490 = ssub.s32 128, 128
          %491 = vsyncadd %s485, %s490
          %s492 = sadd.s32 %s42, %s41
          %s493 = smul.addr %s492, 128
          %s494 = scalar_lea.hbm %s0, %s493
          %s496 = sshll.u32 %s488, 4
          %s497 = int_to_ptr.vmem [resolvable:$true] %s496
          %499 = dma.hbm_to_vmem [thread:$0]  %s494, 128, %s497, %s485
        $region60: #{tpu_custom_call.1} parent=55 // pred_fallthru
          _
        // Predicated region
        $region61: #{tpu_custom_call.1} parent=55 // pred_check
          %p500 = pneg %p94
        $region62: #{tpu_custom_call.1} parent=55 // pred_check_branch
          %502 = sbr.rel (%p500) target = $region64
        $region63: #{tpu_custom_call.1} parent=55 // pred_region
          %s503 = sand.u32 %s34, 1
          %s504 = scalar_lea.sflag [#allocation6], %s503
          %s505 = sand.u32 %s84, 1
          %s506 = smul.addr %s505, 8
          %s507 = scalar_lea.vmem [#allocation5], %s506
          %s509 = ssub.s32 128, 128
          %510 = vsyncadd %s504, %s509
          %s511 = smul.addr %s41, 128
          %s512 = scalar_lea.hbm %s1, %s511
          %s514 = sshll.u32 %s507, 4
          %s515 = int_to_ptr.vmem [resolvable:$true] %s514
          %517 = dma.hbm_to_vmem [thread:$0]  %s512, 128, %s515, %s504
        $region64: #{tpu_custom_call.1} parent=55 // pred_fallthru
          _
        // Predicated region
        $region65: #{tpu_custom_call.1} parent=55 // pred_check
          %p518 = pneg %p120
        $region66: #{tpu_custom_call.1} parent=55 // pred_check_branch
          %520 = sbr.rel (%p518) target = $region68
        $region67: #{tpu_custom_call.1} parent=55 // pred_region
          %s521 = sand.u32 %s34, 1
          %s522 = scalar_lea.sflag [#allocation6], %s521
          %s523 = sand.u32 %s110, 1
          %s524 = smul.addr %s523, 8
          %s525 = scalar_lea.vmem [#allocation7], %s524
          %s527 = ssub.s32 128, 128
          %528 = vsyncadd %s522, %s527
          %s529 = smul.addr %s41, 128
          %s530 = scalar_lea.hbm %s2, %s529
          %s532 = sshll.u32 %s525, 4
          %s533 = int_to_ptr.vmem [resolvable:$true] %s532
          %535 = dma.hbm_to_vmem [thread:$0]  %s530, 128, %s533, %s522
        $region68: #{tpu_custom_call.1} parent=55 // pred_fallthru
          _
        // Predicated region
        $region69: #{tpu_custom_call.1} parent=55 // pred_check
          %p536 = pneg %p148
        $region70: #{tpu_custom_call.1} parent=55 // pred_check_branch
          %538 = sbr.rel (%p536) target = $region72
        $region71: #{tpu_custom_call.1} parent=55 // pred_region
          %s539 = sand.u32 %s34, 1
          %s540 = scalar_lea.sflag [#allocation9], %s539
          %s541 = sand.u32 %s138, 1
          %s542 = smul.addr %s541, 8
          %s543 = scalar_lea.vmem [#allocation8], %s542
          %s545 = ssub.s32 128, 128
          %546 = vsyncadd %s540, %s545
          %s547 = sadd.s32 %s42, %s41
          %s548 = smul.addr %s547, 128
          %s549 = scalar_lea.hbm %s3, %s548
          %s551 = sshll.u32 %s543, 4
          %s552 = int_to_ptr.vmem [resolvable:$true] %s551
          %554 = dma.hbm_to_vmem [thread:$0]  %s549, 128, %s552, %s540
        $region72: #{tpu_custom_call.1} parent=55 // pred_fallthru
          _
      $region56: #{tpu_custom_call.1} parent=5 // pred_fallthru
        _
      %p555 = scmp.le.s32.totalorder 1, %s34
      %p556 = scmp.lt.s32.totalorder %s34, 3
      %p557 = pnand %p555, %p556
      %p558 = pneg %p557
      // Predicated region
      $region73: #{tpu_custom_call.1} parent=5 // pred_check
        _
      $region74: #{tpu_custom_call.1} parent=5 // pred_check_branch
        %560 = sbr.rel (%p557) target = $region76
      $region75: #{tpu_custom_call.1} parent=5 // pred_region
        %s561 = ssub.s32 %s34, 1
        %s562 = sand.u32 %s61, 1
        %s563 = scalar_lea.sflag [#allocation3], %s562
        %s564 = sand.u32 %s61, 1
        %s565 = smul.addr %s564, 8
        %s566 = scalar_lea.vmem [#allocation2], %s565
        // Predicated region
        $region77: #{tpu_custom_call.1} parent=75 // pred_check
          %p567 = pneg %p74
        $region78: #{tpu_custom_call.1} parent=75 // pred_check_branch
          %569 = sbr.rel (%p567) target = $region80
        $region79: #{tpu_custom_call.1} parent=75 // pred_region
          %570 = dma.done %s563, 128
        $region80: #{tpu_custom_call.1} parent=75 // pred_fallthru
          _
        %s571 = sand.u32 %s39, 1
        %s572 = scalar_lea.sflag [#allocation6], %s571
        %s573 = sand.u32 %s87, 1
        %s574 = smul.addr %s573, 8
        %s575 = scalar_lea.vmem [#allocation5], %s574
        // Predicated region
        $region81: #{tpu_custom_call.1} parent=75 // pred_check
          %p576 = pneg %p100
        $region82: #{tpu_custom_call.1} parent=75 // pred_check_branch
          %578 = sbr.rel (%p576) target = $region84
        $region83: #{tpu_custom_call.1} parent=75 // pred_region
          %579 = dma.done %s572, 128
        $region84: #{tpu_custom_call.1} parent=75 // pred_fallthru
          _
        %s580 = sand.u32 %s39, 1
        %s581 = scalar_lea.sflag [#allocation6], %s580
        %s582 = sand.u32 %s113, 1
        %s583 = smul.addr %s582, 8
        %s584 = scalar_lea.vmem [#allocation7], %s583
        // Predicated region
        $region85: #{tpu_custom_call.1} parent=75 // pred_check
          %p585 = pneg %p126
        $region86: #{tpu_custom_call.1} parent=75 // pred_check_branch
          %587 = sbr.rel (%p585) target = $region88
        $region87: #{tpu_custom_call.1} parent=75 // pred_region
          %588 = dma.done %s581, 128
        $region88: #{tpu_custom_call.1} parent=75 // pred_fallthru
          _
        %s589 = sand.u32 %s39, 1
        %s590 = scalar_lea.sflag [#allocation9], %s589
        %s591 = sand.u32 %s141, 1
        %s592 = smul.addr %s591, 8
        %s593 = scalar_lea.vmem [#allocation8], %s592
        // Predicated region
        $region89: #{tpu_custom_call.1} parent=75 // pred_check
          %p594 = pneg %p154
        $region90: #{tpu_custom_call.1} parent=75 // pred_check_branch
          %596 = sbr.rel (%p594) target = $region92
        $region91: #{tpu_custom_call.1} parent=75 // pred_region
          %597 = dma.done %s590, 128
        $region92: #{tpu_custom_call.1} parent=75 // pred_fallthru
          _
        // Predicated region
        $region93: #{tpu_custom_call.1} parent=75 // pred_check
          %p598 = pneg %p175
        $region94: #{tpu_custom_call.1} parent=75 // pred_check_branch
          %600 = sbr.rel (%p598) target = $region96
        $region95: #{tpu_custom_call.1} parent=75 // pred_region
          %601 = dma.done [#allocation9], 512
        $region96: #{tpu_custom_call.1} parent=75 // pred_fallthru
          _
        // Predicated region
        $region97: #{tpu_custom_call.1} parent=75 // pred_check
          %p602 = pneg %p217
        $region98: #{tpu_custom_call.1} parent=75 // pred_check_branch
          %604 = sbr.rel (%p602) target = $region100
        $region99: #{tpu_custom_call.1} parent=75 // pred_region
          %605 = dma.done [#allocation12], 512
        $region100: #{tpu_custom_call.1} parent=75 // pred_fallthru
          _
        // Predicated region
        $region101: #{tpu_custom_call.1} parent=75 // pred_check
          %p606 = pneg %p259
        $region102: #{tpu_custom_call.1} parent=75 // pred_check_branch
          %608 = sbr.rel (%p606) target = $region104
        $region103: #{tpu_custom_call.1} parent=75 // pred_region
          %609 = dma.done [#allocation12], 512
        $region104: #{tpu_custom_call.1} parent=75 // pred_fallthru
          _
        // Predicated region
        $region105: #{tpu_custom_call.1} parent=75 // pred_check
          %p610 = pneg %p301
        $region106: #{tpu_custom_call.1} parent=75 // pred_check_branch
          %612 = sbr.rel (%p610) target = $region108
        $region107: #{tpu_custom_call.1} parent=75 // pred_region
          %613 = dma.done [#allocation15], 512
        $region108: #{tpu_custom_call.1} parent=75 // pred_fallthru
          _
        %s614 = sand.u32 %s61, 1
        %s615 = scalar_lea.sflag [#allocation3], %s614
        %s616 = sand.u32 %s61, 1
        %s617 = smul.addr %s616, 8
        %s618 = scalar_lea.vmem [#allocation2], %s617
        %p619 = pneg %p74
        %p620 = pneg %p71
        %s621 = sand.u32 %s39, 1
        %s622 = scalar_lea.sflag [#allocation6], %s621
        %s623 = sand.u32 %s87, 1
        %s624 = smul.addr %s623, 8
        %s625 = scalar_lea.vmem [#allocation5], %s624
        %p626 = pneg %p100
        %p627 = pneg %p97
        %s628 = sand.u32 %s39, 1
        %s629 = scalar_lea.sflag [#allocation6], %s628
        %s630 = sand.u32 %s113, 1
        %s631 = smul.addr %s630, 8
        %s632 = scalar_lea.vmem [#allocation7], %s631
        %p633 = pneg %p126
        %p634 = pneg %p123
        %s635 = sand.u32 %s39, 1
        %s636 = scalar_lea.sflag [#allocation9], %s635
        %s637 = sand.u32 %s141, 1
        %s638 = smul.addr %s637, 8
        %s639 = scalar_lea.vmem [#allocation8], %s638
        %p640 = pneg %p154
        %p641 = pneg %p151
        %p642 = pneg %p175
        %p643 = pneg %p172
        %p644 = pneg %p196
        %p645 = pneg %p193
        %p646 = pneg %p217
        %p647 = pneg %p214
        %p648 = pneg %p238
        %p649 = pneg %p235
        %p650 = pneg %p259
        %p651 = pneg %p256
        %p652 = pneg %p280
        %p653 = pneg %p277
        %p654 = pneg %p301
        %p655 = pneg %p298
        %p656 = pneg %p322
        %p657 = pneg %p319
        %p658 = pneg %p343
        %p659 = pneg %p340
        %p660 = pneg %p364
        %p661 = pneg %p361
        %p662 = pneg %p392
        %p663 = pneg %p389
        %s664 = sand.u32 %s379, 1
        %s665 = scalar_lea.sflag [#allocation4], %s664
        %s666 = sand.u32 %s379, 1
        %s667 = smul.addr %s666, 8
        %s668 = scalar_lea.vmem [#allocation16], %s667
        %v670 = vld [vmem:[%s566] sm:$0xff]
        %v671 = vpack.c.bf16 %v670, %v670
        %v672 = vld [vmem:[%s575] sm:$0xff]
        %v673 = vpack.c.bf16 %v672, %v672
        %v674 = vld [vmem:[%s584] sm:$0xff]
        %v675 = vpack.c.bf16 %v674, %v674
        %v676 = vld [vmem:[%s593] sm:$0xff]
        %v677 = vld [vmem:[#allocation10] sm:$0xf]
        %v678 = vld [vmem:[#allocation10 + $0x4] sm:$0xf]
        %v679 = vld [vmem:[#allocation10 + $0x8] sm:$0xf]
        %v680 = vld [vmem:[#allocation10 + $0xc] sm:$0xf]
        %v681 = vld [vmem:[#allocation10 + $0x10] sm:$0xf]
        %v682 = vld [vmem:[#allocation10 + $0x14] sm:$0xf]
        %v683 = vld [vmem:[#allocation10 + $0x18] sm:$0xf]
        %v684 = vld [vmem:[#allocation10 + $0x1c] sm:$0xf]
        %v685 = vld [vmem:[%s5] sm:$0x1]
        %v687 = vlaneseq
        %v688 = vshrl.u32 %v687, 7
        %v689 = vsub.s32 0, %v688
        %v690 = vrot.slane %v685, %v689
        %v700 = vunpack.c.l.b16 %v677
        %v701 = vunpack.c.l.b16 %v678
        %v702 = vunpack.c.l.b16 %v679
        %v703 = vunpack.c.l.b16 %v680
        %v704 = vunpack.c.l.b16 %v681
        %v705 = vunpack.c.l.b16 %v682
        %v706 = vunpack.c.l.b16 %v683
        %v707 = vunpack.c.l.b16 %v684
        %v708 = vpack.c.b16 %v701, %v700
        %v709 = vpack.c.b16 %v703, %v702
        %v710 = vpack.c.b16 %v705, %v704
        %v711 = vpack.c.b16 %v707, %v706
        %vm716 = vcmask 523264
        %v718 = vsel %vm716, %v671, 0
        %720 = vmatprep.subr.bf16.mxu0 0
        %721 = vmatpush1.bf16.msra.mxu0 0
        %722 = vmatprep.subr.bf16.mxu0 0
        %723 = vmatpush1.bf16.msra.mxu0 0
        %724 = vmatprep.subr.bf16.mxu0 0
        %725 = vmatpush1.bf16.msra.mxu0 0
        %726 = vmatprep.subr.bf16.mxu0 0
        %727 = vmatpush1.bf16.msra.mxu0 0
        %728 = vmatprep.subr.bf16.mxu0 0
        %729 = vmatpush1.bf16.msra.mxu0 %v711
        %730 = vmatprep.subr.bf16.mxu0 0
        %731 = vmatpush1.bf16.msra.mxu0 %v710
        %732 = vmatprep.subr.bf16.mxu0 0
        %733 = vmatpush1.bf16.msra.mxu0 %v709
        %734 = vmatprep.subr.bf16.mxu0 0
        %735 = vmatpush1.bf16.msra.mxu0 %v708
        %736 = vmatprep.subr.bf16.mxu0 0
        %737 = vmatpush2.bf16.msra.mxu0 0
        %738 = vmatprep.subr.bf16.mxu0 0
        %739 = vmatpush2.bf16.msra.mxu0 0
        %740 = vmatprep.subr.bf16.mxu0 0
        %741 = vmatpush2.bf16.msra.mxu0 0
        %742 = vmatprep.subr.bf16.mxu0 0
        %743 = vmatpush2.bf16.msra.mxu0 0
        %744 = vmatprep.subr.bf16.mxu0 0
        %745 = vmatpush2.bf16.msra.mxu0 0
        %746 = vmatprep.subr.bf16.mxu0 0
        %747 = vmatpush2.bf16.msra.mxu0 0
        %748 = vmatprep.subr.bf16.mxu0 0
        %749 = vmatpush2.bf16.msra.mxu0 0
        %750 = vmatprep.subr.bf16.mxu0 0
        %751 = vmatpush2.bf16.msra.mxu0 0
        %752 = vmatprep.mubr.bf16.mxu0 0
        %753 = vmatmul.mubr.bf16.gmra.mxu0 %v718
        %v754 = vpop.f32.mrf.mxu0
        %v755 = vadd.f32 %v690, %v754
        %v756 = vpop.f32.mrf.mxu0
        %v757 = vpop.f32.mrf.mxu0
        %v758 = vpop.f32.mrf.mxu0
        %759 = vdwg.mxu0
        %v760 = vld [vmem:[#allocation11] sm:$0xf]
        %v761 = vld [vmem:[#allocation11 + $0x4] sm:$0xf]
        %v762 = vld [vmem:[#allocation11 + $0x8] sm:$0xf]
        %v763 = vld [vmem:[#allocation11 + $0xc] sm:$0xf]
        %v764 = vld [vmem:[#allocation11 + $0x10] sm:$0xf]
        %v765 = vld [vmem:[#allocation11 + $0x14] sm:$0xf]
        %v766 = vld [vmem:[#allocation11 + $0x18] sm:$0xf]
        %v767 = vld [vmem:[#allocation11 + $0x1c] sm:$0xf]
        %v768 = vld [vmem:[%s7] sm:$0x1]
        %v770 = vlaneseq
        %v771 = vshrl.u32 %v770, 7
        %v772 = vsub.s32 0, %v771
        %v773 = vrot.slane %v768, %v772
        %v783 = vunpack.c.l.b16 %v760
        %v784 = vunpack.c.l.b16 %v761
        %v785 = vunpack.c.l.b16 %v762
        %v786 = vunpack.c.l.b16 %v763
        %v787 = vunpack.c.l.b16 %v764
        %v788 = vunpack.c.l.b16 %v765
        %v789 = vunpack.c.l.b16 %v766
        %v790 = vunpack.c.l.b16 %v767
        %v791 = vpack.c.b16 %v784, %v783
        %v792 = vpack.c.b16 %v786, %v785
        %v793 = vpack.c.b16 %v788, %v787
        %v794 = vpack.c.b16 %v790, %v789
        %v800 = vsel %vm716, %v673, 0
        %802 = vmatprep.subr.bf16.mxu0 0
        %803 = vmatpush1.bf16.msra.mxu0 0
        %804 = vmatprep.subr.bf16.mxu0 0
        %805 = vmatpush1.bf16.msra.mxu0 0
        %806 = vmatprep.subr.bf16.mxu0 0
        %807 = vmatpush1.bf16.msra.mxu0 0
        %808 = vmatprep.subr.bf16.mxu0 0
        %809 = vmatpush1.bf16.msra.mxu0 0
        %810 = vmatprep.subr.bf16.mxu0 0
        %811 = vmatpush1.bf16.msra.mxu0 %v794
        %812 = vmatprep.subr.bf16.mxu0 0
        %813 = vmatpush1.bf16.msra.mxu0 %v793
        %814 = vmatprep.subr.bf16.mxu0 0
        %815 = vmatpush1.bf16.msra.mxu0 %v792
        %816 = vmatprep.subr.bf16.mxu0 0
        %817 = vmatpush1.bf16.msra.mxu0 %v791
        %818 = vmatprep.subr.bf16.mxu0 0
        %819 = vmatpush2.bf16.msra.mxu0 0
        %820 = vmatprep.subr.bf16.mxu0 0
        %821 = vmatpush2.bf16.msra.mxu0 0
        %822 = vmatprep.subr.bf16.mxu0 0
        %823 = vmatpush2.bf16.msra.mxu0 0
        %824 = vmatprep.subr.bf16.mxu0 0
        %825 = vmatpush2.bf16.msra.mxu0 0
        %826 = vmatprep.subr.bf16.mxu0 0
        %827 = vmatpush2.bf16.msra.mxu0 0
        %828 = vmatprep.subr.bf16.mxu0 0
        %829 = vmatpush2.bf16.msra.mxu0 0
        %830 = vmatprep.subr.bf16.mxu0 0
        %831 = vmatpush2.bf16.msra.mxu0 0
        %832 = vmatprep.subr.bf16.mxu0 0
        %833 = vmatpush2.bf16.msra.mxu0 0
        %834 = vmatprep.mubr.bf16.mxu0 0
        %835 = vmatmul.mubr.bf16.gmra.mxu0 %v800
        %v836 = vpop.f32.mrf.mxu0
        %v837 = vadd.f32 %v773, %v836
        %v838 = vpop.f32.mrf.mxu0
        %v839 = vpop.f32.mrf.mxu0
        %v840 = vpop.f32.mrf.mxu0
        %841 = vdwg.mxu0
        %v842 = vld [vmem:[#allocation13] sm:$0xf]
        %v843 = vld [vmem:[#allocation13 + $0x4] sm:$0xf]
        %v844 = vld [vmem:[#allocation13 + $0x8] sm:$0xf]
        %v845 = vld [vmem:[#allocation13 + $0xc] sm:$0xf]
        %v846 = vld [vmem:[#allocation13 + $0x10] sm:$0xf]
        %v847 = vld [vmem:[#allocation13 + $0x14] sm:$0xf]
        %v848 = vld [vmem:[#allocation13 + $0x18] sm:$0xf]
        %v849 = vld [vmem:[#allocation13 + $0x1c] sm:$0xf]
        %v850 = vld [vmem:[%s9] sm:$0x1]
        %v852 = vlaneseq
        %v853 = vshrl.u32 %v852, 7
        %v854 = vsub.s32 0, %v853
        %v855 = vrot.slane %v850, %v854
        %v865 = vunpack.c.l.b16 %v842
        %v866 = vunpack.c.l.b16 %v843
        %v867 = vunpack.c.l.b16 %v844
        %v868 = vunpack.c.l.b16 %v845
        %v869 = vunpack.c.l.b16 %v846
        %v870 = vunpack.c.l.b16 %v847
        %v871 = vunpack.c.l.b16 %v848
        %v872 = vunpack.c.l.b16 %v849
        %v873 = vpack.c.b16 %v866, %v865
        %v874 = vpack.c.b16 %v868, %v867
        %v875 = vpack.c.b16 %v870, %v869
        %v876 = vpack.c.b16 %v872, %v871
        %v882 = vsel %vm716, %v675, 0
        %884 = vmatprep.subr.bf16.mxu0 0
        %885 = vmatpush1.bf16.msra.mxu0 0
        %886 = vmatprep.subr.bf16.mxu0 0
        %887 = vmatpush1.bf16.msra.mxu0 0
        %888 = vmatprep.subr.bf16.mxu0 0
        %889 = vmatpush1.bf16.msra.mxu0 0
        %890 = vmatprep.subr.bf16.mxu0 0
        %891 = vmatpush1.bf16.msra.mxu0 0
        %892 = vmatprep.subr.bf16.mxu0 0
        %893 = vmatpush1.bf16.msra.mxu0 %v876
        %894 = vmatprep.subr.bf16.mxu0 0
        %895 = vmatpush1.bf16.msra.mxu0 %v875
        %896 = vmatprep.subr.bf16.mxu0 0
        %897 = vmatpush1.bf16.msra.mxu0 %v874
        %898 = vmatprep.subr.bf16.mxu0 0
        %899 = vmatpush1.bf16.msra.mxu0 %v873
        %900 = vmatprep.subr.bf16.mxu0 0
        %901 = vmatpush2.bf16.msra.mxu0 0
        %902 = vmatprep.subr.bf16.mxu0 0
        %903 = vmatpush2.bf16.msra.mxu0 0
        %904 = vmatprep.subr.bf16.mxu0 0
        %905 = vmatpush2.bf16.msra.mxu0 0
        %906 = vmatprep.subr.bf16.mxu0 0
        %907 = vmatpush2.bf16.msra.mxu0 0
        %908 = vmatprep.subr.bf16.mxu0 0
        %909 = vmatpush2.bf16.msra.mxu0 0
        %910 = vmatprep.subr.bf16.mxu0 0
        %911 = vmatpush2.bf16.msra.mxu0 0
        %912 = vmatprep.subr.bf16.mxu0 0
        %913 = vmatpush2.bf16.msra.mxu0 0
        %914 = vmatprep.subr.bf16.mxu0 0
        %915 = vmatpush2.bf16.msra.mxu0 0
        %916 = vmatprep.mubr.bf16.mxu0 0
        %917 = vmatmul.mubr.bf16.gmra.mxu0 %v882
        %v918 = vpop.f32.mrf.mxu0
        %v919 = vadd.f32 %v855, %v918
        %v920 = vpop.f32.mrf.mxu0
        %v921 = vpop.f32.mrf.mxu0
        %v922 = vpop.f32.mrf.mxu0
        %923 = vdwg.mxu0
        %v924 = vmul.f32 %v755, 0.25
        %v925 = vld [vmem:[#allocation14] sm:$0xf]
        %v926 = vld [vmem:[#allocation14 + $0x4] sm:$0xf]
        %v927 = vld [vmem:[#allocation14 + $0x8] sm:$0xf]
        %v928 = vld [vmem:[#allocation14 + $0xc] sm:$0xf]
        %v929 = vld [vmem:[#allocation14 + $0x10] sm:$0xf]
        %v930 = vld [vmem:[#allocation14 + $0x14] sm:$0xf]
        %v931 = vld [vmem:[#allocation14 + $0x18] sm:$0xf]
        %v932 = vld [vmem:[#allocation14 + $0x1c] sm:$0xf]
        %v933 = vpack.c.bf16 %v924, %v924
        %v934 = vpack.c.bf16 %v837, %v837
        %v935 = vpack.c.bf16 %v919, %v919
        %vm936 = vcmask 130048
        %v938 = vsel %vm936, %v933, 0
        %v941 = vsel %vm936, %v934, 0
        %943 = vmatprep.subr.bf16.mxu0 0
        %944 = vmatpush1.bf16.xpose.msra.mxu0 0
        %945 = vmatprep.subr.bf16.mxu0 0
        %946 = vmatpush1.bf16.xpose.msra.mxu0 0
        %947 = vmatprep.subr.bf16.mxu0 0
        %948 = vmatpush1.bf16.xpose.msra.mxu0 0
        %949 = vmatprep.subr.bf16.mxu0 0
        %950 = vmatpush1.bf16.xpose.msra.mxu0 0
        %951 = vmatprep.subr.bf16.mxu0 0
        %952 = vmatpush1.bf16.xpose.msra.mxu0 0
        %953 = vmatprep.subr.bf16.mxu0 0
        %954 = vmatpush1.bf16.xpose.msra.mxu0 0
        %955 = vmatprep.subr.bf16.mxu0 0
        %956 = vmatpush1.bf16.xpose.msra.mxu0 0
        %957 = vmatprep.subr.bf16.mxu0 0
        %958 = vmatpush1.bf16.xpose.msra.mxu0 %v941
        %959 = vmatprep.subr.bf16.mxu0 0
        %960 = vmatpush2.bf16.xpose.msra.mxu0 0
        %961 = vmatprep.subr.bf16.mxu0 0
        %962 = vmatpush2.bf16.xpose.msra.mxu0 0
        %963 = vmatprep.subr.bf16.mxu0 0
        %964 = vmatpush2.bf16.xpose.msra.mxu0 0
        %965 = vmatprep.subr.bf16.mxu0 0
        %966 = vmatpush2.bf16.xpose.msra.mxu0 0
        %967 = vmatprep.subr.bf16.mxu0 0
        %968 = vmatpush2.bf16.xpose.msra.mxu0 0
        %969 = vmatprep.subr.bf16.mxu0 0
        %970 = vmatpush2.bf16.xpose.msra.mxu0 0
        %971 = vmatprep.subr.bf16.mxu0 0
        %972 = vmatpush2.bf16.xpose.msra.mxu0 0
        %973 = vmatprep.subr.bf16.mxu0 0
        %974 = vmatpush2.bf16.xpose.msra.mxu0 0
        %975 = vmatprep.mubr.bf16.mxu0 0
        %976 = vmatmul.mubr.bf16.gmra.mxu0 %v938
        %v977 = vpop.f32.mrf.mxu0
        %v978 = vadd.f32 0.0, %v977
        %v979 = vpop.f32.mrf.mxu0
        %v980 = vpop.f32.mrf.mxu0
        %v981 = vpop.f32.mrf.mxu0
        %982 = vdwg.mxu0
        %vm983 = vcmask 64512
        %v984 = vsel %vm983, %v978, -inf
        %985 = vmax.xlane.f32.xlu0 %v984
        %v986 = vpop.xlane.xlu0 %985
        %v987 = vsub.f32 %v978, %v986
        %v988 = vmul.f32 %v987, 1.442695
        %v989 = vpow.pop %v988
        %v990 = vsel %vm983, %v989, 0.0
        %991 = vadd.xlane.f32.xlu0 %v990
        %v992 = vpop.xlane.xlu0 %991
        %v993 = vrcp.pop %v992
        %v994 = vmul.f32 %v989, %v993
        %v995 = vpack.c.bf16 %v994, %v994
        %v997 = vsel %vm983, %v995, 0
        %vm999 = vcmask 1043456
        %v1001 = vsel %vm999, %v935, 0
        %1003 = vmatprep.subr.bf16.mxu0 0
        %1004 = vmatpush1.bf16.msra.mxu0 0
        %1005 = vmatprep.subr.bf16.mxu0 0
        %1006 = vmatpush1.bf16.msra.mxu0 0
        %1007 = vmatprep.subr.bf16.mxu0 0
        %1008 = vmatpush1.bf16.msra.mxu0 0
        %1009 = vmatprep.subr.bf16.mxu0 0
        %1010 = vmatpush1.bf16.msra.mxu0 0
        %1011 = vmatprep.subr.bf16.mxu0 0
        %1012 = vmatpush1.bf16.msra.mxu0 0
        %1013 = vmatprep.subr.bf16.mxu0 0
        %1014 = vmatpush1.bf16.msra.mxu0 0
        %1015 = vmatprep.subr.bf16.mxu0 0
        %1016 = vmatpush1.bf16.msra.mxu0 0
        %1017 = vmatprep.subr.bf16.mxu0 0
        %1018 = vmatpush1.bf16.msra.mxu0 %v1001
        %1019 = vmatprep.subr.bf16.mxu0 0
        %1020 = vmatpush2.bf16.msra.mxu0 0
        %1021 = vmatprep.subr.bf16.mxu0 0
        %1022 = vmatpush2.bf16.msra.mxu0 0
        %1023 = vmatprep.subr.bf16.mxu0 0
        %1024 = vmatpush2.bf16.msra.mxu0 0
        %1025 = vmatprep.subr.bf16.mxu0 0
        %1026 = vmatpush2.bf16.msra.mxu0 0
        %1027 = vmatprep.subr.bf16.mxu0 0
        %1028 = vmatpush2.bf16.msra.mxu0 0
        %1029 = vmatprep.subr.bf16.mxu0 0
        %1030 = vmatpush2.bf16.msra.mxu0 0
        %1031 = vmatprep.subr.bf16.mxu0 0
        %1032 = vmatpush2.bf16.msra.mxu0 0
        %1033 = vmatprep.subr.bf16.mxu0 0
        %1034 = vmatpush2.bf16.msra.mxu0 0
        %1035 = vmatprep.mubr.bf16.mxu0 0
        %1036 = vmatmul.mubr.bf16.gmra.mxu0 %v997
        %v1037 = vpop.f32.mrf.mxu0
        %v1038 = vadd.f32 0.0, %v1037
        %v1039 = vpop.f32.mrf.mxu0
        %v1040 = vpop.f32.mrf.mxu0
        %v1041 = vpop.f32.mrf.mxu0
        %1042 = vdwg.mxu0
        %v1043 = vpack.c.bf16 %v1038, %v1038
        %1045 = vrot.lane.b32.xlu0 %v933, 112
        %v1046 = vpop.permute.xlu0 %1045
        %1048 = vrot.lane.b32.xlu0 %v934, 112
        %v1049 = vpop.permute.xlu0 %1048
        %v1051 = vsel %vm936, %v1046, 0
        %v1054 = vsel %vm936, %v1049, 0
        %1056 = vmatprep.subr.bf16.mxu0 0
        %1057 = vmatpush1.bf16.xpose.msra.mxu0 0
        %1058 = vmatprep.subr.bf16.mxu0 0
        %1059 = vmatpush1.bf16.xpose.msra.mxu0 0
        %1060 = vmatprep.subr.bf16.mxu0 0
        %1061 = vmatpush1.bf16.xpose.msra.mxu0 0
        %1062 = vmatprep.subr.bf16.mxu0 0
        %1063 = vmatpush1.bf16.xpose.msra.mxu0 0
        %1064 = vmatprep.subr.bf16.mxu0 0
        %1065 = vmatpush1.bf16.xpose.msra.mxu0 0
        %1066 = vmatprep.subr.bf16.mxu0 0
        %1067 = vmatpush1.bf16.xpose.msra.mxu0 0
        %1068 = vmatprep.subr.bf16.mxu0 0
        %1069 = vmatpush1.bf16.xpose.msra.mxu0 0
        %1070 = vmatprep.subr.bf16.mxu0 0
        %1071 = vmatpush1.bf16.xpose.msra.mxu0 %v1054
        %1072 = vmatprep.subr.bf16.mxu0 0
        %1073 = vmatpush2.bf16.xpose.msra.mxu0 0
        %1074 = vmatprep.subr.bf16.mxu0 0
        %1075 = vmatpush2.bf16.xpose.msra.mxu0 0
        %1076 = vmatprep.subr.bf16.mxu0 0
        %1077 = vmatpush2.bf16.xpose.msra.mxu0 0
        %1078 = vmatprep.subr.bf16.mxu0 0
        %1079 = vmatpush2.bf16.xpose.msra.mxu0 0
        %1080 = vmatprep.subr.bf16.mxu0 0
        %1081 = vmatpush2.bf16.xpose.msra.mxu0 0
        %1082 = vmatprep.subr.bf16.mxu0 0
        %1083 = vmatpush2.bf16.xpose.msra.mxu0 0
        %1084 = vmatprep.subr.bf16.mxu0 0
        %1085 = vmatpush2.bf16.xpose.msra.mxu0 0
        %1086 = vmatprep.subr.bf16.mxu0 0
        %1087 = vmatpush2.bf16.xpose.msra.mxu0 0
        %1088 = vmatprep.mubr.bf16.mxu0 0
        %1089 = vmatmul.mubr.bf16.gmra.mxu0 %v1051
        %v1090 = vpop.f32.mrf.mxu0
        %v1091 = vadd.f32 0.0, %v1090
        %v1092 = vpop.f32.mrf.mxu0
        %v1093 = vpop.f32.mrf.mxu0
        %v1094 = vpop.f32.mrf.mxu0
        %1095 = vdwg.mxu0
        %v1096 = vsel %vm983, %v1091, -inf
        %1097 = vmax.xlane.f32.xlu0 %v1096
        %v1098 = vpop.xlane.xlu0 %1097
        %v1099 = vsub.f32 %v1091, %v1098
        %v1100 = vmul.f32 %v1099, 1.442695
        %v1101 = vpow.pop %v1100
        %v1102 = vsel %vm983, %v1101, 0.0
        %1103 = vadd.xlane.f32.xlu0 %v1102
        %v1104 = vpop.xlane.xlu0 %1103
        %v1105 = vrcp.pop %v1104
        %v1106 = vmul.f32 %v1101, %v1105
        %v1107 = vpack.c.bf16 %v1106, %v1106
        %1109 = vrot.lane.b32.xlu0 %v935, 112
        %v1110 = vpop.permute.xlu0 %1109
        %v1112 = vsel %vm983, %v1107, 0
        %v1115 = vsel %vm999, %v1110, 0
        %1117 = vmatprep.subr.bf16.mxu0 0
        %1118 = vmatpush1.bf16.msra.mxu0 0
        %1119 = vmatprep.subr.bf16.mxu0 0
        %1120 = vmatpush1.bf16.msra.mxu0 0
        %1121 = vmatprep.subr.bf16.mxu0 0
        %1122 = vmatpush1.bf16.msra.mxu0 0
        %1123 = vmatprep.subr.bf16.mxu0 0
        %1124 = vmatpush1.bf16.msra.mxu0 0
        %1125 = vmatprep.subr.bf16.mxu0 0
        %1126 = vmatpush1.bf16.msra.mxu0 0
        %1127 = vmatprep.subr.bf16.mxu0 0
        %1128 = vmatpush1.bf16.msra.mxu0 0
        %1129 = vmatprep.subr.bf16.mxu0 0
        %1130 = vmatpush1.bf16.msra.mxu0 0
        %1131 = vmatprep.subr.bf16.mxu0 0
        %1132 = vmatpush1.bf16.msra.mxu0 %v1115
        %1133 = vmatprep.subr.bf16.mxu0 0
        %1134 = vmatpush2.bf16.msra.mxu0 0
        %1135 = vmatprep.subr.bf16.mxu0 0
        %1136 = vmatpush2.bf16.msra.mxu0 0
        %1137 = vmatprep.subr.bf16.mxu0 0
        %1138 = vmatpush2.bf16.msra.mxu0 0
        %1139 = vmatprep.subr.bf16.mxu0 0
        %1140 = vmatpush2.bf16.msra.mxu0 0
        %1141 = vmatprep.subr.bf16.mxu0 0
        %1142 = vmatpush2.bf16.msra.mxu0 0
        %1143 = vmatprep.subr.bf16.mxu0 0
        %1144 = vmatpush2.bf16.msra.mxu0 0
        %1145 = vmatprep.subr.bf16.mxu0 0
        %1146 = vmatpush2.bf16.msra.mxu0 0
        %1147 = vmatprep.subr.bf16.mxu0 0
        %1148 = vmatpush2.bf16.msra.mxu0 0
        %1149 = vmatprep.mubr.bf16.mxu0 0
        %1150 = vmatmul.mubr.bf16.gmra.mxu0 %v1112
        %v1151 = vpop.f32.mrf.mxu0
        %v1152 = vadd.f32 0.0, %v1151
        %v1153 = vpop.f32.mrf.mxu0
        %v1154 = vpop.f32.mrf.mxu0
        %v1155 = vpop.f32.mrf.mxu0
        %1156 = vdwg.mxu0
        %v1157 = vpack.c.bf16 %v1152, %v1152
        %v1160 = vunpack.c.l.b16 %v927
        %v1161 = vunpack.c.l.b16 %v928
        %v1162 = vpack.c.b16 %v1161, %v1160
        %v1165 = vsel %vm936, %v1157, 0
        %1167 = vmatprep.subr.bf16.mxu0 0
        %1168 = vmatpush1.bf16.msra.mxu0 0
        %1169 = vmatprep.subr.bf16.mxu0 0
        %1170 = vmatpush1.bf16.msra.mxu0 0
        %1171 = vmatprep.subr.bf16.mxu0 0
        %1172 = vmatpush1.bf16.msra.mxu0 0
        %1173 = vmatprep.subr.bf16.mxu0 0
        %1174 = vmatpush1.bf16.msra.mxu0 0
        %1175 = vmatprep.subr.bf16.mxu0 0
        %1176 = vmatpush1.bf16.msra.mxu0 0
        %1177 = vmatprep.subr.bf16.mxu0 0
        %1178 = vmatpush1.bf16.msra.mxu0 0
        %1179 = vmatprep.subr.bf16.mxu0 0
        %1180 = vmatpush1.bf16.msra.mxu0 0
        %1181 = vmatprep.subr.bf16.mxu0 0
        %1182 = vmatpush1.bf16.msra.mxu0 %v1162
        %1183 = vmatprep.subr.bf16.mxu0 0
        %1184 = vmatpush2.bf16.msra.mxu0 0
        %1185 = vmatprep.subr.bf16.mxu0 0
        %1186 = vmatpush2.bf16.msra.mxu0 0
        %1187 = vmatprep.subr.bf16.mxu0 0
        %1188 = vmatpush2.bf16.msra.mxu0 0
        %1189 = vmatprep.subr.bf16.mxu0 0
        %1190 = vmatpush2.bf16.msra.mxu0 0
        %1191 = vmatprep.subr.bf16.mxu0 0
        %1192 = vmatpush2.bf16.msra.mxu0 0
        %1193 = vmatprep.subr.bf16.mxu0 0
        %1194 = vmatpush2.bf16.msra.mxu0 0
        %1195 = vmatprep.subr.bf16.mxu0 0
        %1196 = vmatpush2.bf16.msra.mxu0 0
        %1197 = vmatprep.subr.bf16.mxu0 0
        %1198 = vmatpush2.bf16.msra.mxu0 0
        %1199 = vmatprep.mubr.bf16.mxu0 0
        %1200 = vmatmul.mubr.bf16.gmra.mxu0 %v1165
        %v1201 = vpop.f32.mrf.mxu0
        %v1202 = vadd.f32 0.0, %v1201
        %v1203 = vpop.f32.mrf.mxu0
        %v1204 = vpop.f32.mrf.mxu0
        %v1205 = vpop.f32.mrf.mxu0
        %1206 = vdwg.mxu0
        %v1209 = vunpack.c.l.b16 %v925
        %v1210 = vunpack.c.l.b16 %v926
        %v1211 = vpack.c.b16 %v1210, %v1209
        %v1214 = vsel %vm936, %v1043, 0
        %1216 = vmatprep.subr.bf16.mxu0 0
        %1217 = vmatpush1.bf16.msra.mxu0 0
        %1218 = vmatprep.subr.bf16.mxu0 0
        %1219 = vmatpush1.bf16.msra.mxu0 0
        %1220 = vmatprep.subr.bf16.mxu0 0
        %1221 = vmatpush1.bf16.msra.mxu0 0
        %1222 = vmatprep.subr.bf16.mxu0 0
        %1223 = vmatpush1.bf16.msra.mxu0 0
        %1224 = vmatprep.subr.bf16.mxu0 0
        %1225 = vmatpush1.bf16.msra.mxu0 0
        %1226 = vmatprep.subr.bf16.mxu0 0
        %1227 = vmatpush1.bf16.msra.mxu0 0
        %1228 = vmatprep.subr.bf16.mxu0 0
        %1229 = vmatpush1.bf16.msra.mxu0 0
        %1230 = vmatprep.subr.bf16.mxu0 0
        %1231 = vmatpush1.bf16.msra.mxu0 %v1211
        %1232 = vmatprep.subr.bf16.mxu0 0
        %1233 = vmatpush2.bf16.msra.mxu0 0
        %1234 = vmatprep.subr.bf16.mxu0 0
        %1235 = vmatpush2.bf16.msra.mxu0 0
        %1236 = vmatprep.subr.bf16.mxu0 0
        %1237 = vmatpush2.bf16.msra.mxu0 0
        %1238 = vmatprep.subr.bf16.mxu0 0
        %1239 = vmatpush2.bf16.msra.mxu0 0
        %1240 = vmatprep.subr.bf16.mxu0 0
        %1241 = vmatpush2.bf16.msra.mxu0 0
        %1242 = vmatprep.subr.bf16.mxu0 0
        %1243 = vmatpush2.bf16.msra.mxu0 0
        %1244 = vmatprep.subr.bf16.mxu0 0
        %1245 = vmatpush2.bf16.msra.mxu0 0
        %1246 = vmatprep.subr.bf16.mxu0 0
        %1247 = vmatpush2.bf16.msra.mxu0 0
        %1248 = vmatprep.mubr.bf16.mxu0 0
        %1249 = vmatmul.mubr.bf16.gmra.mxu0 %v1214
        %v1250 = vpop.f32.mrf.mxu0
        %v1251 = vadd.f32 %v1202, %v1250
        %v1252 = vpop.f32.mrf.mxu0
        %v1253 = vpop.f32.mrf.mxu0
        %v1254 = vpop.f32.mrf.mxu0
        %1255 = vdwg.mxu0
        %1256 = vrot.lane.b32.xlu0 %v933, 96
        %v1257 = vpop.permute.xlu0 %1256
        %1258 = vrot.lane.b32.xlu0 %v934, 96
        %v1259 = vpop.permute.xlu0 %1258
        %v1261 = vsel %vm936, %v1257, 0
        %v1264 = vsel %vm936, %v1259, 0
        %1266 = vmatprep.subr.bf16.mxu0 0
        %1267 = vmatpush1.bf16.xpose.msra.mxu0 0
        %1268 = vmatprep.subr.bf16.mxu0 0
        %1269 = vmatpush1.bf16.xpose.msra.mxu0 0
        %1270 = vmatprep.subr.bf16.mxu0 0
        %1271 = vmatpush1.bf16.xpose.msra.mxu0 0
        %1272 = vmatprep.subr.bf16.mxu0 0
        %1273 = vmatpush1.bf16.xpose.msra.mxu0 0
        %1274 = vmatprep.subr.bf16.mxu0 0
        %1275 = vmatpush1.bf16.xpose.msra.mxu0 0
        %1276 = vmatprep.subr.bf16.mxu0 0
        %1277 = vmatpush1.bf16.xpose.msra.mxu0 0
        %1278 = vmatprep.subr.bf16.mxu0 0
        %1279 = vmatpush1.bf16.xpose.msra.mxu0 0
        %1280 = vmatprep.subr.bf16.mxu0 0
        %1281 = vmatpush1.bf16.xpose.msra.mxu0 %v1264
        %1282 = vmatprep.subr.bf16.mxu0 0
        %1283 = vmatpush2.bf16.xpose.msra.mxu0 0
        %1284 = vmatprep.subr.bf16.mxu0 0
        %1285 = vmatpush2.bf16.xpose.msra.mxu0 0
        %1286 = vmatprep.subr.bf16.mxu0 0
        %1287 = vmatpush2.bf16.xpose.msra.mxu0 0
        %1288 = vmatprep.subr.bf16.mxu0 0
        %1289 = vmatpush2.bf16.xpose.msra.mxu0 0
        %1290 = vmatprep.subr.bf16.mxu0 0
        %1291 = vmatpush2.bf16.xpose.msra.mxu0 0
        %1292 = vmatprep.subr.bf16.mxu0 0
        %1293 = vmatpush2.bf16.xpose.msra.mxu0 0
        %1294 = vmatprep.subr.bf16.mxu0 0
        %1295 = vmatpush2.bf16.xpose.msra.mxu0 0
        %1296 = vmatprep.subr.bf16.mxu0 0
        %1297 = vmatpush2.bf16.xpose.msra.mxu0 0
        %1298 = vmatprep.mubr.bf16.mxu0 0
        %1299 = vmatmul.mubr.bf16.gmra.mxu0 %v1261
        %v1300 = vpop.f32.mrf.mxu0
        %v1301 = vadd.f32 0.0, %v1300
        %v1302 = vpop.f32.mrf.mxu0
        %v1303 = vpop.f32.mrf.mxu0
        %v1304 = vpop.f32.mrf.mxu0
        %1305 = vdwg.mxu0
        %v1306 = vsel %vm983, %v1301, -inf
        %1307 = vmax.xlane.f32.xlu0 %v1306
        %v1308 = vpop.xlane.xlu0 %1307
        %v1309 = vsub.f32 %v1301, %v1308
        %v1310 = vmul.f32 %v1309, 1.442695
        %v1311 = vpow.pop %v1310
        %v1312 = vsel %vm983, %v1311, 0.0
        %1313 = vadd.xlane.f32.xlu0 %v1312
        %v1314 = vpop.xlane.xlu0 %1313
        %v1315 = vrcp.pop %v1314
        %v1316 = vmul.f32 %v1311, %v1315
        %v1317 = vpack.c.bf16 %v1316, %v1316
        %1318 = vrot.lane.b32.xlu0 %v935, 96
        %v1319 = vpop.permute.xlu0 %1318
        %v1321 = vsel %vm983, %v1317, 0
        %v1324 = vsel %vm999, %v1319, 0
        %1326 = vmatprep.subr.bf16.mxu0 0
        %1327 = vmatpush1.bf16.msra.mxu0 0
        %1328 = vmatprep.subr.bf16.mxu0 0
        %1329 = vmatpush1.bf16.msra.mxu0 0
        %1330 = vmatprep.subr.bf16.mxu0 0
        %1331 = vmatpush1.bf16.msra.mxu0 0
        %1332 = vmatprep.subr.bf16.mxu0 0
        %1333 = vmatpush1.bf16.msra.mxu0 0
        %1334 = vmatprep.subr.bf16.mxu0 0
        %1335 = vmatpush1.bf16.msra.mxu0 0
        %1336 = vmatprep.subr.bf16.mxu0 0
        %1337 = vmatpush1.bf16.msra.mxu0 0
        %1338 = vmatprep.subr.bf16.mxu0 0
        %1339 = vmatpush1.bf16.msra.mxu0 0
        %1340 = vmatprep.subr.bf16.mxu0 0
        %1341 = vmatpush1.bf16.msra.mxu0 %v1324
        %1342 = vmatprep.subr.bf16.mxu0 0
        %1343 = vmatpush2.bf16.msra.mxu0 0
        %1344 = vmatprep.subr.bf16.mxu0 0
        %1345 = vmatpush2.bf16.msra.mxu0 0
        %1346 = vmatprep.subr.bf16.mxu0 0
        %1347 = vmatpush2.bf16.msra.mxu0 0
        %1348 = vmatprep.subr.bf16.mxu0 0
        %1349 = vmatpush2.bf16.msra.mxu0 0
        %1350 = vmatprep.subr.bf16.mxu0 0
        %1351 = vmatpush2.bf16.msra.mxu0 0
        %1352 = vmatprep.subr.bf16.mxu0 0
        %1353 = vmatpush2.bf16.msra.mxu0 0
        %1354 = vmatprep.subr.bf16.mxu0 0
        %1355 = vmatpush2.bf16.msra.mxu0 0
        %1356 = vmatprep.subr.bf16.mxu0 0
        %1357 = vmatpush2.bf16.msra.mxu0 0
        %1358 = vmatprep.mubr.bf16.mxu0 0
        %1359 = vmatmul.mubr.bf16.gmra.mxu0 %v1321
        %v1360 = vpop.f32.mrf.mxu0
        %v1361 = vadd.f32 0.0, %v1360
        %v1362 = vpop.f32.mrf.mxu0
        %v1363 = vpop.f32.mrf.mxu0
        %v1364 = vpop.f32.mrf.mxu0
        %1365 = vdwg.mxu0
        %v1366 = vpack.c.bf16 %v1361, %v1361
        %v1369 = vunpack.c.l.b16 %v929
        %v1370 = vunpack.c.l.b16 %v930
        %v1371 = vpack.c.b16 %v1370, %v1369
        %v1374 = vsel %vm936, %v1366, 0
        %1376 = vmatprep.subr.bf16.mxu0 0
        %1377 = vmatpush1.bf16.msra.mxu0 0
        %1378 = vmatprep.subr.bf16.mxu0 0
        %1379 = vmatpush1.bf16.msra.mxu0 0
        %1380 = vmatprep.subr.bf16.mxu0 0
        %1381 = vmatpush1.bf16.msra.mxu0 0
        %1382 = vmatprep.subr.bf16.mxu0 0
        %1383 = vmatpush1.bf16.msra.mxu0 0
        %1384 = vmatprep.subr.bf16.mxu0 0
        %1385 = vmatpush1.bf16.msra.mxu0 0
        %1386 = vmatprep.subr.bf16.mxu0 0
        %1387 = vmatpush1.bf16.msra.mxu0 0
        %1388 = vmatprep.subr.bf16.mxu0 0
        %1389 = vmatpush1.bf16.msra.mxu0 0
        %1390 = vmatprep.subr.bf16.mxu0 0
        %1391 = vmatpush1.bf16.msra.mxu0 %v1371
        %1392 = vmatprep.subr.bf16.mxu0 0
        %1393 = vmatpush2.bf16.msra.mxu0 0
        %1394 = vmatprep.subr.bf16.mxu0 0
        %1395 = vmatpush2.bf16.msra.mxu0 0
        %1396 = vmatprep.subr.bf16.mxu0 0
        %1397 = vmatpush2.bf16.msra.mxu0 0
        %1398 = vmatprep.subr.bf16.mxu0 0
        %1399 = vmatpush2.bf16.msra.mxu0 0
        %1400 = vmatprep.subr.bf16.mxu0 0
        %1401 = vmatpush2.bf16.msra.mxu0 0
        %1402 = vmatprep.subr.bf16.mxu0 0
        %1403 = vmatpush2.bf16.msra.mxu0 0
        %1404 = vmatprep.subr.bf16.mxu0 0
        %1405 = vmatpush2.bf16.msra.mxu0 0
        %1406 = vmatprep.subr.bf16.mxu0 0
        %1407 = vmatpush2.bf16.msra.mxu0 0
        %1408 = vmatprep.mubr.bf16.mxu0 0
        %1409 = vmatmul.mubr.bf16.gmra.mxu0 %v1374
        %v1410 = vpop.f32.mrf.mxu0
        %v1411 = vadd.f32 0.0, %v1410
        %v1412 = vpop.f32.mrf.mxu0
        %v1413 = vpop.f32.mrf.mxu0
        %v1414 = vpop.f32.mrf.mxu0
        %1415 = vdwg.mxu0
        %v1416 = vadd.f32 %v1251, %v1411
        %1417 = vrot.lane.b32.xlu0 %v933, 80
        %v1418 = vpop.permute.xlu0 %1417
        %1419 = vrot.lane.b32.xlu0 %v934, 80
        %v1420 = vpop.permute.xlu0 %1419
        %v1422 = vsel %vm936, %v1418, 0
        %v1425 = vsel %vm936, %v1420, 0
        %1427 = vmatprep.subr.bf16.mxu0 0
        %1428 = vmatpush1.bf16.xpose.msra.mxu0 0
        %1429 = vmatprep.subr.bf16.mxu0 0
        %1430 = vmatpush1.bf16.xpose.msra.mxu0 0
        %1431 = vmatprep.subr.bf16.mxu0 0
        %1432 = vmatpush1.bf16.xpose.msra.mxu0 0
        %1433 = vmatprep.subr.bf16.mxu0 0
        %1434 = vmatpush1.bf16.xpose.msra.mxu0 0
        %1435 = vmatprep.subr.bf16.mxu0 0
        %1436 = vmatpush1.bf16.xpose.msra.mxu0 0
        %1437 = vmatprep.subr.bf16.mxu0 0
        %1438 = vmatpush1.bf16.xpose.msra.mxu0 0
        %1439 = vmatprep.subr.bf16.mxu0 0
        %1440 = vmatpush1.bf16.xpose.msra.mxu0 0
        %1441 = vmatprep.subr.bf16.mxu0 0
        %1442 = vmatpush1.bf16.xpose.msra.mxu0 %v1425
        %1443 = vmatprep.subr.bf16.mxu0 0
        %1444 = vmatpush2.bf16.xpose.msra.mxu0 0
        %1445 = vmatprep.subr.bf16.mxu0 0
        %1446 = vmatpush2.bf16.xpose.msra.mxu0 0
        %1447 = vmatprep.subr.bf16.mxu0 0
        %1448 = vmatpush2.bf16.xpose.msra.mxu0 0
        %1449 = vmatprep.subr.bf16.mxu0 0
        %1450 = vmatpush2.bf16.xpose.msra.mxu0 0
        %1451 = vmatprep.subr.bf16.mxu0 0
        %1452 = vmatpush2.bf16.xpose.msra.mxu0 0
        %1453 = vmatprep.subr.bf16.mxu0 0
        %1454 = vmatpush2.bf16.xpose.msra.mxu0 0
        %1455 = vmatprep.subr.bf16.mxu0 0
        %1456 = vmatpush2.bf16.xpose.msra.mxu0 0
        %1457 = vmatprep.subr.bf16.mxu0 0
        %1458 = vmatpush2.bf16.xpose.msra.mxu0 0
        %1459 = vmatprep.mubr.bf16.mxu0 0
        %1460 = vmatmul.mubr.bf16.gmra.mxu0 %v1422
        %v1461 = vpop.f32.mrf.mxu0
        %v1462 = vadd.f32 0.0, %v1461
        %v1463 = vpop.f32.mrf.mxu0
        %v1464 = vpop.f32.mrf.mxu0
        %v1465 = vpop.f32.mrf.mxu0
        %1466 = vdwg.mxu0
        %v1467 = vsel %vm983, %v1462, -inf
        %1468 = vmax.xlane.f32.xlu0 %v1467
        %v1469 = vpop.xlane.xlu0 %1468
        %v1470 = vsub.f32 %v1462, %v1469
        %v1471 = vmul.f32 %v1470, 1.442695
        %v1472 = vpow.pop %v1471
        %v1473 = vsel %vm983, %v1472, 0.0
        %1474 = vadd.xlane.f32.xlu0 %v1473
        %v1475 = vpop.xlane.xlu0 %1474
        %v1476 = vrcp.pop %v1475
        %v1477 = vmul.f32 %v1472, %v1476
        %v1478 = vpack.c.bf16 %v1477, %v1477
        %1479 = vrot.lane.b32.xlu0 %v935, 80
        %v1480 = vpop.permute.xlu0 %1479
        %v1482 = vsel %vm983, %v1478, 0
        %v1485 = vsel %vm999, %v1480, 0
        %1487 = vmatprep.subr.bf16.mxu0 0
        %1488 = vmatpush1.bf16.msra.mxu0 0
        %1489 = vmatprep.subr.bf16.mxu0 0
        %1490 = vmatpush1.bf16.msra.mxu0 0
        %1491 = vmatprep.subr.bf16.mxu0 0
        %1492 = vmatpush1.bf16.msra.mxu0 0
        %1493 = vmatprep.subr.bf16.mxu0 0
        %1494 = vmatpush1.bf16.msra.mxu0 0
        %1495 = vmatprep.subr.bf16.mxu0 0
        %1496 = vmatpush1.bf16.msra.mxu0 0
        %1497 = vmatprep.subr.bf16.mxu0 0
        %1498 = vmatpush1.bf16.msra.mxu0 0
        %1499 = vmatprep.subr.bf16.mxu0 0
        %1500 = vmatpush1.bf16.msra.mxu0 0
        %1501 = vmatprep.subr.bf16.mxu0 0
        %1502 = vmatpush1.bf16.msra.mxu0 %v1485
        %1503 = vmatprep.subr.bf16.mxu0 0
        %1504 = vmatpush2.bf16.msra.mxu0 0
        %1505 = vmatprep.subr.bf16.mxu0 0
        %1506 = vmatpush2.bf16.msra.mxu0 0
        %1507 = vmatprep.subr.bf16.mxu0 0
        %1508 = vmatpush2.bf16.msra.mxu0 0
        %1509 = vmatprep.subr.bf16.mxu0 0
        %1510 = vmatpush2.bf16.msra.mxu0 0
        %1511 = vmatprep.subr.bf16.mxu0 0
        %1512 = vmatpush2.bf16.msra.mxu0 0
        %1513 = vmatprep.subr.bf16.mxu0 0
        %1514 = vmatpush2.bf16.msra.mxu0 0
        %1515 = vmatprep.subr.bf16.mxu0 0
        %1516 = vmatpush2.bf16.msra.mxu0 0
        %1517 = vmatprep.subr.bf16.mxu0 0
        %1518 = vmatpush2.bf16.msra.mxu0 0
        %1519 = vmatprep.mubr.bf16.mxu0 0
        %1520 = vmatmul.mubr.bf16.gmra.mxu0 %v1482
        %v1521 = vpop.f32.mrf.mxu0
        %v1522 = vadd.f32 0.0, %v1521
        %v1523 = vpop.f32.mrf.mxu0
        %v1524 = vpop.f32.mrf.mxu0
        %v1525 = vpop.f32.mrf.mxu0
        %1526 = vdwg.mxu0
        %v1527 = vpack.c.bf16 %v1522, %v1522
        %v1530 = vunpack.c.l.b16 %v931
        %v1531 = vunpack.c.l.b16 %v932
        %v1532 = vpack.c.b16 %v1531, %v1530
        %v1535 = vsel %vm936, %v1527, 0
        %1537 = vmatprep.subr.bf16.mxu0 0
        %1538 = vmatpush1.bf16.msra.mxu0 0
        %1539 = vmatprep.subr.bf16.mxu0 0
        %1540 = vmatpush1.bf16.msra.mxu0 0
        %1541 = vmatprep.subr.bf16.mxu0 0
        %1542 = vmatpush1.bf16.msra.mxu0 0
        %1543 = vmatprep.subr.bf16.mxu0 0
        %1544 = vmatpush1.bf16.msra.mxu0 0
        %1545 = vmatprep.subr.bf16.mxu0 0
        %1546 = vmatpush1.bf16.msra.mxu0 0
        %1547 = vmatprep.subr.bf16.mxu0 0
        %1548 = vmatpush1.bf16.msra.mxu0 0
        %1549 = vmatprep.subr.bf16.mxu0 0
        %1550 = vmatpush1.bf16.msra.mxu0 0
        %1551 = vmatprep.subr.bf16.mxu0 0
        %1552 = vmatpush1.bf16.msra.mxu0 %v1532
        %1553 = vmatprep.subr.bf16.mxu0 0
        %1554 = vmatpush2.bf16.msra.mxu0 0
        %1555 = vmatprep.subr.bf16.mxu0 0
        %1556 = vmatpush2.bf16.msra.mxu0 0
        %1557 = vmatprep.subr.bf16.mxu0 0
        %1558 = vmatpush2.bf16.msra.mxu0 0
        %1559 = vmatprep.subr.bf16.mxu0 0
        %1560 = vmatpush2.bf16.msra.mxu0 0
        %1561 = vmatprep.subr.bf16.mxu0 0
        %1562 = vmatpush2.bf16.msra.mxu0 0
        %1563 = vmatprep.subr.bf16.mxu0 0
        %1564 = vmatpush2.bf16.msra.mxu0 0
        %1565 = vmatprep.subr.bf16.mxu0 0
        %1566 = vmatpush2.bf16.msra.mxu0 0
        %1567 = vmatprep.subr.bf16.mxu0 0
        %1568 = vmatpush2.bf16.msra.mxu0 0
        %1569 = vmatprep.mubr.bf16.mxu0 0
        %1570 = vmatmul.mubr.bf16.gmra.mxu0 %v1535
        %v1571 = vpop.f32.mrf.mxu0
        %v1572 = vadd.f32 0.0, %v1571
        %v1573 = vpop.f32.mrf.mxu0
        %v1574 = vpop.f32.mrf.mxu0
        %v1575 = vpop.f32.mrf.mxu0
        %1576 = vdwg.mxu0
        %v1577 = vadd.f32 %v1416, %v1572
        %v1578 = vld [vmem:[%s11] sm:$0x1]
        %v1580 = vlaneseq
        %v1581 = vshrl.u32 %v1580, 7
        %v1582 = vsub.s32 0, %v1581
        %v1583 = vrot.slane %v1578, %v1582
        %v1585 = vadd.f32 %v1577, %v1583
        %v1586 = vadd.f32 %v1585, %v676
        %v1587 = vsel %vm716, %v1586, 0.0
        %1588 = vadd.xlane.f32.xlu0 %v1587
        %v1589 = vpop.xlane.xlu0 %1588
        %v1590 = vrcp.pop 64.0
        %v1591 = vmul.f32 %v1589, %v1590
        %v1592 = vsub.f32 %v1586, %v1591
        %v1593 = vmul.f32 %v1592, %v1592
        %v1594 = vsel %vm716, %v1593, 0.0
        %1595 = vadd.xlane.f32.xlu0 %v1594
        %v1596 = vpop.xlane.xlu0 %1595
        %v1597 = vmul.f32 %v1596, %v1590
        %v1598 = vadd.f32 %v1597, 1e-05
        %v1599 = vrsqrt.pop %v1598
        %v1600 = vmul.f32 %v1592, %v1599
        %v1601 = vld [vmem:[%s12] sm:$0x1]
        %v1603 = vlaneseq
        %v1604 = vshrl.u32 %v1603, 7
        %v1605 = vsub.s32 0, %v1604
        %v1606 = vrot.slane %v1601, %v1605
        %v1608 = vmul.f32 %v1600, %v1606
        %v1609 = vld [vmem:[%s13] sm:$0x1]
        %v1611 = vlaneseq
        %v1612 = vshrl.u32 %v1611, 7
        %v1613 = vsub.s32 0, %v1612
        %v1614 = vrot.slane %v1609, %v1613
        %v1616 = vadd.f32 %v1608, %v1614
        %1617 = vst.msk [vmem:[%s668] sm:$0xff] %vm716, %v1616
        %s1618 = sand.u32 %s379, 1
        %s1619 = scalar_lea.sflag [#allocation4], %s1618
        %s1620 = sand.u32 %s379, 1
        %s1621 = smul.addr %s1620, 8
        %s1622 = scalar_lea.vmem [#allocation16], %s1621
        // Predicated region
        $region109: #{tpu_custom_call.1} parent=75 // pred_check
          %p1623 = pneg %p389
        $region110: #{tpu_custom_call.1} parent=75 // pred_check_branch
          %1625 = sbr.rel (%p1623) target = $region112
        $region111: #{tpu_custom_call.1} parent=75 // pred_region
          %s1627 = ssub.s32 128, 128
          %1628 = vsyncadd %s1619, %s1627
          %s1629 = sadd.s32 %s44, %s43
          %s1630 = smul.addr %s1629, 128
          %s1631 = scalar_lea.hbm %s14, %s1630
          %s1633 = sshll.u32 %s1622, 4
          %s1634 = int_to_ptr.vmem [resolvable:$true] %s1633
          %1636 = dma.vmem_to_hbm [thread:$0]  %s1634, 128, %s1631, %s1619
        $region112: #{tpu_custom_call.1} parent=75 // pred_fallthru
          _
      $region76: #{tpu_custom_call.1} parent=5 // pred_fallthru
        _
      %p1637 = scmp.le.s32.totalorder 2, %s34
      // Predicated region
      $region113: #{tpu_custom_call.1} parent=5 // pred_check
        %p1638 = pneg %p1637
      $region114: #{tpu_custom_call.1} parent=5 // pred_check_branch
        %1640 = sbr.rel (%p1638) target = $region116
      $region115: #{tpu_custom_call.1} parent=5 // pred_region
        %s1641 = ssub.s32 %s34, 2
        // Predicated region
        $region117: #{tpu_custom_call.1} parent=115 // pred_check
          %p1642 = pneg %p395
        $region118: #{tpu_custom_call.1} parent=115 // pred_check_branch
          %1644 = sbr.rel (%p1642) target = $region120
        $region119: #{tpu_custom_call.1} parent=115 // pred_region
          %s1645 = sand.u32 %s380, 1
          %s1646 = scalar_lea.sflag [#allocation4], %s1645
          %s1647 = sand.u32 %s380, 1
          %s1648 = smul.addr %s1647, 8
          %s1649 = scalar_lea.vmem [#allocation16], %s1648
          %1650 = dma.done %s1646, 128
        $region120: #{tpu_custom_call.1} parent=115 // pred_fallthru
          _
      $region116: #{tpu_custom_call.1} parent=5 // pred_fallthru
        _
    $region6: #{tpu_custom_call.1} parent=1 // loop_footer
      %s38 = sadd.s32 1, %s34
    $region7: #{tpu_custom_call.1} parent=1 // loop_footer_branch
      %33 = sbr.rel target = $region3
    $region8: #{tpu_custom_call.1} parent=1 // loop_exit
      _
    %1651 = vsyncpa [#allocation3], 1
    %s1652 = scalar_lea.sflag [#allocation3], 1
    %1653 = vsyncpa %s1652, 1
    %1654 = vsyncpa [#allocation6], 1
    %s1655 = scalar_lea.sflag [#allocation6], 1
    %1656 = vsyncpa %s1655, 1
    %1657 = vsyncpa [#allocation9], 1
    %s1658 = scalar_lea.sflag [#allocation9], 1
    %1659 = vsyncpa %s1658, 1
    %1660 = vsyncpa [#allocation12], 1
    %1661 = vsyncpa [#allocation15], 1
    %1662 = vsyncpa [#allocation4], 1
    %s1663 = scalar_lea.sflag [#allocation4], 1
    %1664 = vsyncpa %s1663, 1

</llo_original>
